<compile_context>
chip_gen: v6e
topology: v6e:2x2x1
jax: 0.10.0
libtpu: 0.0.40
codegen_flags: <defaults>
</compile_context>

<pallas_src>
import math

import jax
import jax.numpy as jnp
from jax import lax
from jax.experimental import pallas as pl
from jax.experimental.pallas import tpu as pltpu


def _round_up(x, m):
    return -(-int(x) // int(m)) * int(m)


def _pad2(a, rows, cols):
    r0, c0 = a.shape
    return jnp.pad(a, ((0, rows - r0), (0, cols - c0)))


def _vmem_budget_bytes():
    """Usable VMEM budget for this kernel on the current generation."""
    cap = 64 << 20  # conservative default (v7x physical VMEM per TC)
    try:
        info = pltpu.get_tpu_info()
        cap = int(getattr(info, "vmem_capacity_bytes", cap))
    except Exception:
        pass
    # leave headroom for Mosaic internal scratch, semaphores, etc.
    return max(int(cap * 0.70), 24 << 20)


def _pick_tile_t(T, per_t_bytes, fixed_bytes, budget_bytes):
    """Largest time tile whose padded footprint fits the VMEM budget."""
    avail = budget_bytes - fixed_bytes
    cap = max(1, avail // max(per_t_bytes, 1))
    cap = int(min(cap, T, 512))
    if T <= cap:
        return int(T)
    tile = 1
    while tile * 2 <= cap:
        tile *= 2
    return tile


def _pick_unroll(tile_t, B_pad, N_pad):
    """Expose the tiny per-step body to the LLO scheduler without vreg spills."""
    state_bytes = B_pad * N_pad * 4          # one live (B_pad, N_pad) f32 value
    if state_bytes <= 8 * 1024:
        cap = 8
    elif state_bytes <= 64 * 1024:
        cap = 4
    else:
        cap = 2
    for u in range(min(cap, tile_t), 0, -1):
        if tile_t % u == 0:
            return u
    return 1


def make_lowrnn_kernel(tile_t, B_pad, decay, alpha, unroll, low_rank):
    def kernel(*refs):
        if low_rank:
            (x_ref, noise_ref, w_in_ref, wv_ref, wu_ref, w_out_ref, h0_ref,
             hid_ref, out_ref, act_ref, h_carry_ref, act_carry_ref) = refs

            def rec_fn(act):
                tmp = jnp.dot(act, wv_ref[...], preferred_element_type=jnp.float32)
                return jnp.dot(tmp, wu_ref[...], preferred_element_type=jnp.float32)
        else:
            (x_ref, noise_ref, w_in_ref, w_rec_ref, w_out_ref, h0_ref,
             hid_ref, out_ref, act_ref, h_carry_ref, act_carry_ref) = refs

            def rec_fn(act):
                return jnp.dot(act, w_rec_ref[...], preferred_element_type=jnp.float32)

        # ---- initialize the carried recurrent state on the first time block ----
        @pl.when(pl.program_id(0) == 0)
        def _():
            h0 = h0_ref[...]
            h_carry_ref[...] = h0
            act_carry_ref[...] = jnp.tanh(h0)

        # ---- input projection for this time tile (off the serial path) ----
        # in_strength and alpha = dt/tau are pre-folded into w_in_ref; operands
        # are already 2-D and (8,128)-aligned, so no in-kernel reshape is needed.
        act_ref[...] = jnp.dot(
            x_ref[...].astype(jnp.float32), w_in_ref[...],
            preferred_element_type=jnp.float32)
        # act_ref now holds alpha * aligned_input; each step overwrites its row
        # block with tanh(hidden_t) after it is consumed, so the readout reuses it.

        h = h_carry_ref[...]
        act = act_carry_ref[...]          # tanh of the carried hidden state

        # ---- serial recurrence over the time tile ----
        def body(t, carry):
            h, act = carry
            row = pl.multiple_of(t * B_pad, B_pad)
            rec = rec_fn(act)             # (alpha/N) folded into the rec weights
            noise = noise_ref[pl.ds(row, B_pad), :].astype(jnp.float32)
            new_h = (decay * h + rec
                     + act_ref[pl.ds(row, B_pad), :]
                     + alpha * noise)     # alpha applied in-kernel (VPU, ~free)
            new_act = jnp.tanh(new_h)     # computed once: next step + readout
            hid_ref[pl.ds(row, B_pad), :] = new_h.astype(hid_ref.dtype)
            act_ref[pl.ds(row, B_pad), :] = new_act
            return new_h, new_act

        h, act = lax.fori_loop(0, tile_t, body, (h, act), unroll=unroll)
        h_carry_ref[...] = h
        act_carry_ref[...] = act

        # ---- readout for this tile (off the serial path) ----
        # out_strength and 1/N are pre-folded into w_out_ref.
        out_ref[...] = jnp.dot(
            act_ref[...], w_out_ref[...],
            preferred_element_type=jnp.float32).astype(out_ref.dtype)

    return kernel


def lowrnn_forward(P, params, batch_input, noise_tbn, tile_t=None,
                   io_dtype=jnp.float32, time_major_out=False):
    """batch_input: (B, T, C_in) like the PyTorch module.
    noise_tbn: (T, B, N) raw recurrent noise (sqrt(2*tau)*g_rec*randn), time-major.
    Returns (hidden_t (B, T, N), out (B, T, C_out)) like the PyTorch module
    (or time-major (T, B, .) if time_major_out=True to skip the final transpose)."""
    B, T, C_in = batch_input.shape
    N = int(P["N_Neuron"])
    C_out = int(P["out_Channel"])
    r = int(params["w_v"].shape[0])
    alpha = float(P["dt"]) / float(P["tau"])
    decay = 1.0 - alpha

    # ---- pad to sublane/lane multiples once, in HBM ----
    B_pad = _round_up(B, 8)
    N_pad = _round_up(N, 128)
    C_in_pad = _round_up(C_in, 128)
    C_out_pad = _round_up(C_out, 128)
    r_pad = _round_up(r, 128)

    # ---- fold all constant scales into the weights, once, outside the kernel ----
    w_in = params["w_in"].astype(jnp.float32)            # (N, C_in)
    w_v = params["w_v"].astype(jnp.float32)              # (r, N)
    w_u = params["w_u"].astype(jnp.float32)              # (N, r)
    w_out = params["w_out"].astype(jnp.float32)          # (C_out, N)
    in_s = params["in_strength"].astype(jnp.float32)     # (C_in,)
    out_s = params["out_strength"].astype(jnp.float32)   # (C_out,)
    h0 = params["hidden_0"].astype(jnp.float32).reshape(1, N)

    w_in_eff = _pad2(alpha * (in_s[:, None] * w_in.T), C_in_pad, N_pad)
    w_out_eff = _pad2((w_out.T * out_s[None, :]) / N, N_pad, C_out_pad)
    h0_b = jnp.broadcast_to(_pad2(h0, 1, N_pad), (B_pad, N_pad))

    budget = _vmem_budget_bytes()

    # Dense-collapsed recurrence for small/medium N; low-rank form when the
    # double-buffered dense (N_pad, N_pad) block would eat too much VMEM.
    dense_wrec_bytes = 2 * 4 * N_pad * N_pad
    low_rank = (dense_wrec_bytes > budget // 4) and (2 * r_pad <= N_pad)
    if low_rank:
        wv_eff = _pad2((alpha / N) * w_v.T, N_pad, r_pad)     # (N_pad, r_pad)
        wu_eff = _pad2(w_u.T, r_pad, N_pad)                   # (r_pad, N_pad)
        rec_weights = (wv_eff, wu_eff)
        rec_specs = [
            pl.BlockSpec((N_pad, r_pad), lambda i: (0, 0)),
            pl.BlockSpec((r_pad, N_pad), lambda i: (0, 0)),
        ]
        rec_w_bytes = 2 * 4 * (N_pad * r_pad + r_pad * N_pad)
    else:
        w_rec = _pad2((alpha / N) * (w_v.T @ w_u.T), N_pad, N_pad)
        rec_weights = (w_rec,)
        rec_specs = [pl.BlockSpec((N_pad, N_pad), lambda i: (0, 0))]
        rec_w_bytes = dense_wrec_bytes

    # ---- padded-footprint tile selection (includes weight double-buffers) ----
    io_itemsize = jnp.dtype(io_dtype).itemsize
    per_t = (2 * B_pad * (C_in_pad + N_pad) * io_itemsize    # x + noise, dbl-buffered
             + 2 * B_pad * (N_pad + C_out_pad) * 4           # hid + out, dbl-buffered
             + B_pad * N_pad * 4)                            # act scratch
    fixed = (2 * 4 * (C_in_pad * N_pad + N_pad * C_out_pad + B_pad * N_pad)
             + rec_w_bytes
             + 2 * B_pad * N_pad * 4                         # carried h / tanh(h)
             + (2 << 20))                                    # Mosaic internal slack
    if tile_t is None:
        tile_t = _pick_tile_t(T, per_t, fixed, budget)
    tile_t = int(tile_t)
    T_pad = _round_up(T, tile_t)
    unroll = _pick_unroll(tile_t, B_pad, N_pad)

    needed = fixed + per_t * tile_t
    vmem_limit = int(max(needed + (2 << 20), 16 << 20))      # never below the need

    # ---- build the flat (T_pad*B_pad, C) streamed tensors (lane-dense) ----
    x_tbc = jnp.transpose(batch_input, (1, 0, 2)).astype(io_dtype)     # (T,B,Cin)
    x_flat = jnp.pad(
        x_tbc, ((0, T_pad - T), (0, B_pad - B), (0, C_in_pad - C_in))
    ).reshape(T_pad * B_pad, C_in_pad)
    noise_flat = jnp.pad(
        noise_tbn.astype(io_dtype), ((0, T_pad - T), (0, B_pad - B), (0, N_pad - N))
    ).reshape(T_pad * B_pad, N_pad)

    kernel = make_lowrnn_kernel(tile_t, B_pad, decay, alpha, unroll, low_rank)
    rows = tile_t * B_pad

    hid_flat, out_flat = pl.pallas_call(
        kernel,
        out_shape=(
            jax.ShapeDtypeStruct((T_pad * B_pad, N_pad), jnp.float32),
            jax.ShapeDtypeStruct((T_pad * B_pad, C_out_pad), jnp.float32),
        ),
        grid_spec=pltpu.PrefetchScalarGridSpec(
            num_scalar_prefetch=0,
            grid=(T_pad // tile_t,),
            in_specs=[
                pl.BlockSpec((rows, C_in_pad), lambda i: (i, 0)),       # x
                pl.BlockSpec((rows, N_pad), lambda i: (i, 0)),          # noise
                pl.BlockSpec((C_in_pad, N_pad), lambda i: (0, 0)),      # w_in_eff
                *rec_specs,                                             # recurrence
                pl.BlockSpec((N_pad, C_out_pad), lambda i: (0, 0)),     # w_out_eff
                pl.BlockSpec((B_pad, N_pad), lambda i: (0, 0)),         # hidden_0
            ],
            out_specs=(
                pl.BlockSpec((rows, N_pad), lambda i: (i, 0)),          # hidden_t
                pl.BlockSpec((rows, C_out_pad), lambda i: (i, 0)),      # out
            ),
            scratch_shapes=[
                pltpu.VMEM((rows, N_pad), jnp.float32),   # aligned -> tanh cache
                pltpu.VMEM((B_pad, N_pad), jnp.float32),  # carried hidden
                pltpu.VMEM((B_pad, N_pad), jnp.float32),  # carried tanh(hidden)
            ],
        ),
        compiler_params=pltpu.CompilerParams(
            dimension_semantics=("arbitrary",),   # time axis carries a recurrence
            vmem_limit_bytes=vmem_limit,
        ),
    )(x_flat, noise_flat, w_in_eff, *rec_weights, w_out_eff, h0_b)

    hid_tbn = hid_flat.reshape(T_pad, B_pad, N_pad)[:T, :B, :N]
    out_tbo = out_flat.reshape(T_pad, B_pad, C_out_pad)[:T, :B, :C_out]
    if time_major_out:
        return hid_tbn, out_tbo
    # Module-compatible (B, T, *) outputs.
    return jnp.transpose(hid_tbn, (1, 0, 2)), jnp.transpose(out_tbo, (1, 0, 2))


def lowrnn_reference(P, params, batch_input, noise_tbn):
    """Pure-JAX reference replicating the PyTorch forward exactly
    (noise given time-major (T, B, N))."""
    B, T, C_in = batch_input.shape
    N = int(P["N_Neuron"])
    alpha = P["dt"] / P["tau"]
    x = batch_input * params["in_strength"][None, None, :]
    aligned = jnp.einsum("btc,nc->btn", x, params["w_in"])
    hidden = jnp.broadcast_to(params["hidden_0"][None, :], (B, N))
    hids = []
    for t in range(T):
        act_h = jnp.tanh(hidden)
        rec = (act_h @ params["w_v"].T) @ params["w_u"].T / N
        hidden = (1.0 - alpha) * hidden + alpha * (rec + aligned[:, t, :] + noise_tbn[t])
        hids.append(hidden)
    hidden_t = jnp.stack(hids, axis=1)
    out = jnp.einsum("btn,on->bto", jnp.tanh(hidden_t), params["w_out"])
    out = out * params["out_strength"][None, None, :] / N
    return hidden_t, out


if __name__ == "__main__":
    P = {
        "N_Neuron": 32,
        "N_rank": 2,
        "act_func": "Tanh",
        "in_Channel": 4,
        "out_Channel": 2,
        "tau": 0.1,
        "dt": 0.02,
        "g_rec": 0.1,
        "train_hidden_0": True,
    }
    B, T = 2, 8
    N, r = P["N_Neuron"], P["N_rank"]
    C_in, C_out = P["in_Channel"], P["out_Channel"]

    key = jax.random.PRNGKey(0)
    kx, kin, kv, ku, kout, kh0, kn = jax.random.split(key, 7)

    params = {
        # deterministic synthetic weights (shapes follow the nn.Linear layers)
        "w_in": jax.random.normal(kin, (N, C_in), jnp.float32) / math.sqrt(C_in),
        "w_v": jax.random.normal(kv, (r, N), jnp.float32) / math.sqrt(N),
        "w_u": jax.random.normal(ku, (N, r), jnp.float32) / math.sqrt(r),
        "w_out": jax.random.normal(kout, (C_out, N), jnp.float32) / math.sqrt(N),
        "in_strength": jnp.ones((C_in,), jnp.float32),
        "out_strength": jnp.ones((C_out,), jnp.float32),
        "hidden_0": jax.random.normal(kh0, (N,), jnp.float32),  # train_hidden_0=True
    }

    batch_input = jax.random.normal(kx, (B, T, C_in), jnp.float32)
    # Recurrent noise is random in PyTorch (torch.randn per step); here it is
    # generated deterministically outside, time-major, and fed to the kernel.
    noise_tbn = (
        math.sqrt(2.0 * P["tau"]) * P["g_rec"]
        * jax.random.normal(kn, (T, B, N), jnp.float32)
    )

    hidden_t, out = jax.block_until_ready(
        lowrnn_forward(P, params, batch_input, noise_tbn)
    )
    hid_ref, out_ref = lowrnn_reference(P, params, batch_input, noise_tbn)

    assert hidden_t.shape == (B, T, N) and out.shape == (B, T, C_out)
    assert jnp.allclose(hidden_t, hid_ref, rtol=1e-4, atol=5e-5)
    assert jnp.allclose(out, out_ref, rtol=1e-4, atol=5e-5)
    print("KERNEL_OK")
</pallas_src>

<mosaic_0001>
module attributes {stable_mosaic.version = 11 : i64} {
  func.func @kernel(%arg0: i32, %arg1: memref<64x128xf32, #tpu.memory_space<vmem>>, %arg2: memref<64x128xf32, #tpu.memory_space<vmem>>, %arg3: memref<128x128xf32, #tpu.memory_space<vmem>>, %arg4: memref<128x128xf32, #tpu.memory_space<vmem>>, %arg5: memref<128x128xf32, #tpu.memory_space<vmem>>, %arg6: memref<8x128xf32, #tpu.memory_space<vmem>>, %arg7: memref<64x128xf32, #tpu.memory_space<vmem>>, %arg8: memref<64x128xf32, #tpu.memory_space<vmem>>, %arg9: memref<64x128xf32, #tpu.memory_space<vmem>>, %arg10: memref<8x128xf32, #tpu.memory_space<vmem>>, %arg11: memref<8x128xf32, #tpu.memory_space<vmem>>) attributes {dimension_semantics = [#tpu.dimension_semantics<arbitrary>], iteration_bounds = array<i64: 1>, scalar_prefetch = 0 : i64, scratch_operands = 3 : i64, tpu.core_type = #tpu.core_type<tc>, window_params = [{transform_indices = @transform_0, window_bounds = array<i64: 64, 128>}, {transform_indices = @transform_1, window_bounds = array<i64: 64, 128>}, {pipeline_mode = #tpu.pipeline_mode<synchronous>, transform_indices = @transform_2, window_bounds = array<i64: 128, 128>}, {pipeline_mode = #tpu.pipeline_mode<synchronous>, transform_indices = @transform_3, window_bounds = array<i64: 128, 128>}, {pipeline_mode = #tpu.pipeline_mode<synchronous>, transform_indices = @transform_4, window_bounds = array<i64: 128, 128>}, {pipeline_mode = #tpu.pipeline_mode<synchronous>, transform_indices = @transform_5, window_bounds = array<i64: 8, 128>}, {transform_indices = @transform_6, window_bounds = array<i64: 64, 128>}, {transform_indices = @transform_7, window_bounds = array<i64: 64, 128>}]} {
    %c0_i32 = arith.constant 0 : i32
    %0 = arith.cmpi eq, %arg0, %c0_i32 : i32
    %1 = arith.extui %0 : i1 to i32
    %c0_i32_0 = arith.constant 0 : i32
    %2 = arith.cmpi ne, %1, %c0_i32_0 : i32
    scf.if %2 {
      %c0_102 = arith.constant 0 : index
      %c0_103 = arith.constant 0 : index
      %175 = vector.load %arg6[%c0_102, %c0_103] : memref<8x128xf32, #tpu.memory_space<vmem>>, vector<8x128xf32>
      %c0_104 = arith.constant 0 : index
      %c0_105 = arith.constant 0 : index
      %176 = vector.load %arg10[%c0_104, %c0_105] : memref<8x128xf32, #tpu.memory_space<vmem>>, vector<8x128xf32>
      tpu.vector_store %arg10[%c0_104, %c0_105], %175 {strides = array<i32>} : memref<8x128xf32, #tpu.memory_space<vmem>>, vector<8x128xf32>,
      %177 = math.tanh %175 : vector<8x128xf32>
      %c0_106 = arith.constant 0 : index
      %c0_107 = arith.constant 0 : index
      %178 = vector.load %arg11[%c0_106, %c0_107] : memref<8x128xf32, #tpu.memory_space<vmem>>, vector<8x128xf32>
      tpu.vector_store %arg11[%c0_106, %c0_107], %177 {strides = array<i32>} : memref<8x128xf32, #tpu.memory_space<vmem>>, vector<8x128xf32>,
    } else {
    }
    %c0 = arith.constant 0 : index
    %c0_1 = arith.constant 0 : index
    %3 = vector.load %arg1[%c0, %c0_1] : memref<64x128xf32, #tpu.memory_space<vmem>>, vector<64x128xf32>
    %c0_2 = arith.constant 0 : index
    %c0_3 = arith.constant 0 : index
    %4 = vector.load %arg3[%c0_2, %c0_3] : memref<128x128xf32, #tpu.memory_space<vmem>>, vector<128x128xf32>
    %cst = arith.constant dense<0.000000e+00> : vector<64x128xf32>
    %5 = tpu.matmul %3, %4, %cst {dimension_numbers = #tpu.dot_dimension_numbers<[1], [0], [0], [1], [0, 0, 1, 1], [], []>} : vector<64x128xf32>, vector<128x128xf32>, vector<64x128xf32> -> vector<64x128xf32>
    %c0_4 = arith.constant 0 : index
    %c0_5 = arith.constant 0 : index
    %6 = vector.load %arg9[%c0_4, %c0_5] : memref<64x128xf32, #tpu.memory_space<vmem>>, vector<64x128xf32>
    tpu.vector_store %arg9[%c0_4, %c0_5], %5 {strides = array<i32>} : memref<64x128xf32, #tpu.memory_space<vmem>>, vector<64x128xf32>,
    %c0_6 = arith.constant 0 : index
    %c0_7 = arith.constant 0 : index
    %7 = vector.load %arg10[%c0_6, %c0_7] : memref<8x128xf32, #tpu.memory_space<vmem>>, vector<8x128xf32>
    %c0_8 = arith.constant 0 : index
    %c0_9 = arith.constant 0 : index
    %8 = vector.load %arg11[%c0_8, %c0_9] : memref<8x128xf32, #tpu.memory_space<vmem>>, vector<8x128xf32>
    %c0_i32_10 = arith.constant 0 : i32
    %c8_i32 = arith.constant 8 : i32
    %9 = arith.muli %c0_i32_10, %c8_i32 : i32
    %10 = tpu.assume_multiple %9, 8 : i32
    %c0_11 = arith.constant 0 : index
    %c0_12 = arith.constant 0 : index
    %11 = vector.load %arg4[%c0_11, %c0_12] : memref<128x128xf32, #tpu.memory_space<vmem>>, vector<128x128xf32>
    %cst_13 = arith.constant dense<0.000000e+00> : vector<8x128xf32>
    %12 = tpu.matmul %8, %11, %cst_13 {dimension_numbers = #tpu.dot_dimension_numbers<[1], [0], [0], [1], [0, 0, 1, 1], [], []>} : vector<8x128xf32>, vector<128x128xf32>, vector<8x128xf32> -> vector<8x128xf32>
    %13 = arith.index_cast %10 : i32 to index
    %c0_14 = arith.constant 0 : index
    %14 = vector.load %arg2[%13, %c0_14] : memref<64x128xf32, #tpu.memory_space<vmem>>, vector<8x128xf32>
    %cst_15 = arith.constant 8.000000e-01 : f32
    %15 = vector.broadcast %cst_15 : f32 to vector<8x128xf32>
    %16 = arith.mulf %15, %7 : vector<8x128xf32>
    %17 = arith.addf %16, %12 : vector<8x128xf32>
    %18 = arith.index_cast %10 : i32 to index
    %c0_16 = arith.constant 0 : index
    %19 = vector.load %arg9[%18, %c0_16] : memref<64x128xf32, #tpu.memory_space<vmem>>, vector<8x128xf32>
    %20 = arith.addf %17, %19 : vector<8x128xf32>
    %cst_17 = arith.constant 2.000000e-01 : f32
    %21 = vector.broadcast %cst_17 : f32 to vector<8x128xf32>
    %22 = arith.mulf %21, %14 : vector<8x128xf32>
    %23 = arith.addf %20, %22 : vector<8x128xf32>
    %24 = math.tanh %23 : vector<8x128xf32>
    %25 = arith.index_cast %10 : i32 to index
    %c0_18 = arith.constant 0 : index
    %26 = vector.load %arg7[%25, %c0_18] : memref<64x128xf32, #tpu.memory_space<vmem>>, vector<8x128xf32>
    tpu.vector_store %arg7[%25, %c0_18], %23 {strides = array<i32>} : memref<64x128xf32, #tpu.memory_space<vmem>>, vector<8x128xf32>,
    %27 = arith.index_cast %10 : i32 to index
    %c0_19 = arith.constant 0 : index
    %28 = vector.load %arg9[%27, %c0_19] : memref<64x128xf32, #tpu.memory_space<vmem>>, vector<8x128xf32>
    tpu.vector_store %arg9[%27, %c0_19], %24 {strides = array<i32>} : memref<64x128xf32, #tpu.memory_space<vmem>>, vector<8x128xf32>,
    %c1_i32 = arith.constant 1 : i32
    %c8_i32_20 = arith.constant 8 : i32
    %29 = arith.muli %c1_i32, %c8_i32_20 : i32
    %30 = tpu.assume_multiple %29, 8 : i32
    %c0_21 = arith.constant 0 : index
    %c0_22 = arith.constant 0 : index
    %31 = vector.load %arg4[%c0_21, %c0_22] : memref<128x128xf32, #tpu.memory_space<vmem>>, vector<128x128xf32>
    %cst_23 = arith.constant dense<0.000000e+00> : vector<8x128xf32>
    %32 = tpu.matmul %24, %31, %cst_23 {dimension_numbers = #tpu.dot_dimension_numbers<[1], [0], [0], [1], [0, 0, 1, 1], [], []>} : vector<8x128xf32>, vector<128x128xf32>, vector<8x128xf32> -> vector<8x128xf32>
    %33 = arith.index_cast %30 : i32 to index
    %c0_24 = arith.constant 0 : index
    %34 = vector.load %arg2[%33, %c0_24] : memref<64x128xf32, #tpu.memory_space<vmem>>, vector<8x128xf32>
    %cst_25 = arith.constant 8.000000e-01 : f32
    %35 = vector.broadcast %cst_25 : f32 to vector<8x128xf32>
    %36 = arith.mulf %35, %23 : vector<8x128xf32>
    %37 = arith.addf %36, %32 : vector<8x128xf32>
    %38 = arith.index_cast %30 : i32 to index
    %c0_26 = arith.constant 0 : index
    %39 = vector.load %arg9[%38, %c0_26] : memref<64x128xf32, #tpu.memory_space<vmem>>, vector<8x128xf32>
    %40 = arith.addf %37, %39 : vector<8x128xf32>
    %cst_27 = arith.constant 2.000000e-01 : f32
    %41 = vector.broadcast %cst_27 : f32 to vector<8x128xf32>
    %42 = arith.mulf %41, %34 : vector<8x128xf32>
    %43 = arith.addf %40, %42 : vector<8x128xf32>
    %44 = math.tanh %43 : vector<8x128xf32>
    %45 = arith.index_cast %30 : i32 to index
    %c0_28 = arith.constant 0 : index
    %46 = vector.load %arg7[%45, %c0_28] : memref<64x128xf32, #tpu.memory_space<vmem>>, vector<8x128xf32>
    tpu.vector_store %arg7[%45, %c0_28], %43 {strides = array<i32>} : memref<64x128xf32, #tpu.memory_space<vmem>>, vector<8x128xf32>,
    %47 = arith.index_cast %30 : i32 to index
    %c0_29 = arith.constant 0 : index
    %48 = vector.load %arg9[%47, %c0_29] : memref<64x128xf32, #tpu.memory_space<vmem>>, vector<8x128xf32>
    tpu.vector_store %arg9[%47, %c0_29], %44 {strides = array<i32>} : memref<64x128xf32, #tpu.memory_space<vmem>>, vector<8x128xf32>,
    %c2_i32 = arith.constant 2 : i32
    %c8_i32_30 = arith.constant 8 : i32
    %49 = arith.muli %c2_i32, %c8_i32_30 : i32
    %50 = tpu.assume_multiple %49, 8 : i32
    %c0_31 = arith.constant 0 : index
    %c0_32 = arith.constant 0 : index
    %51 = vector.load %arg4[%c0_31, %c0_32] : memref<128x128xf32, #tpu.memory_space<vmem>>, vector<128x128xf32>
    %cst_33 = arith.constant dense<0.000000e+00> : vector<8x128xf32>
    %52 = tpu.matmul %44, %51, %cst_33 {dimension_numbers = #tpu.dot_dimension_numbers<[1], [0], [0], [1], [0, 0, 1, 1], [], []>} : vector<8x128xf32>, vector<128x128xf32>, vector<8x128xf32> -> vector<8x128xf32>
    %53 = arith.index_cast %50 : i32 to index
    %c0_34 = arith.constant 0 : index
    %54 = vector.load %arg2[%53, %c0_34] : memref<64x128xf32, #tpu.memory_space<vmem>>, vector<8x128xf32>
    %cst_35 = arith.constant 8.000000e-01 : f32
    %55 = vector.broadcast %cst_35 : f32 to vector<8x128xf32>
    %56 = arith.mulf %55, %43 : vector<8x128xf32>
    %57 = arith.addf %56, %52 : vector<8x128xf32>
    %58 = arith.index_cast %50 : i32 to index
    %c0_36 = arith.constant 0 : index
    %59 = vector.load %arg9[%58, %c0_36] : memref<64x128xf32, #tpu.memory_space<vmem>>, vector<8x128xf32>
    %60 = arith.addf %57, %59 : vector<8x128xf32>
    %cst_37 = arith.constant 2.000000e-01 : f32
    %61 = vector.broadcast %cst_37 : f32 to vector<8x128xf32>
    %62 = arith.mulf %61, %54 : vector<8x128xf32>
    %63 = arith.addf %60, %62 : vector<8x128xf32>
    %64 = math.tanh %63 : vector<8x128xf32>
    %65 = arith.index_cast %50 : i32 to index
    %c0_38 = arith.constant 0 : index
    %66 = vector.load %arg7[%65, %c0_38] : memref<64x128xf32, #tpu.memory_space<vmem>>, vector<8x128xf32>
    tpu.vector_store %arg7[%65, %c0_38], %63 {strides = array<i32>} : memref<64x128xf32, #tpu.memory_space<vmem>>, vector<8x128xf32>,
    %67 = arith.index_cast %50 : i32 to index
    %c0_39 = arith.constant 0 : index
    %68 = vector.load %arg9[%67, %c0_39] : memref<64x128xf32, #tpu.memory_space<vmem>>, vector<8x128xf32>
    tpu.vector_store %arg9[%67, %c0_39], %64 {strides = array<i32>} : memref<64x128xf32, #tpu.memory_space<vmem>>, vector<8x128xf32>,
    %c3_i32 = arith.constant 3 : i32
    %c8_i32_40 = arith.constant 8 : i32
    %69 = arith.muli %c3_i32, %c8_i32_40 : i32
    %70 = tpu.assume_multiple %69, 8 : i32
    %c0_41 = arith.constant 0 : index
    %c0_42 = arith.constant 0 : index
    %71 = vector.load %arg4[%c0_41, %c0_42] : memref<128x128xf32, #tpu.memory_space<vmem>>, vector<128x128xf32>
    %cst_43 = arith.constant dense<0.000000e+00> : vector<8x128xf32>
    %72 = tpu.matmul %64, %71, %cst_43 {dimension_numbers = #tpu.dot_dimension_numbers<[1], [0], [0], [1], [0, 0, 1, 1], [], []>} : vector<8x128xf32>, vector<128x128xf32>, vector<8x128xf32> -> vector<8x128xf32>
    %73 = arith.index_cast %70 : i32 to index
    %c0_44 = arith.constant 0 : index
    %74 = vector.load %arg2[%73, %c0_44] : memref<64x128xf32, #tpu.memory_space<vmem>>, vector<8x128xf32>
    %cst_45 = arith.constant 8.000000e-01 : f32
    %75 = vector.broadcast %cst_45 : f32 to vector<8x128xf32>
    %76 = arith.mulf %75, %63 : vector<8x128xf32>
    %77 = arith.addf %76, %72 : vector<8x128xf32>
    %78 = arith.index_cast %70 : i32 to index
    %c0_46 = arith.constant 0 : index
    %79 = vector.load %arg9[%78, %c0_46] : memref<64x128xf32, #tpu.memory_space<vmem>>, vector<8x128xf32>
    %80 = arith.addf %77, %79 : vector<8x128xf32>
    %cst_47 = arith.constant 2.000000e-01 : f32
    %81 = vector.broadcast %cst_47 : f32 to vector<8x128xf32>
    %82 = arith.mulf %81, %74 : vector<8x128xf32>
    %83 = arith.addf %80, %82 : vector<8x128xf32>
    %84 = math.tanh %83 : vector<8x128xf32>
    %85 = arith.index_cast %70 : i32 to index
    %c0_48 = arith.constant 0 : index
    %86 = vector.load %arg7[%85, %c0_48] : memref<64x128xf32, #tpu.memory_space<vmem>>, vector<8x128xf32>
    tpu.vector_store %arg7[%85, %c0_48], %83 {strides = array<i32>} : memref<64x128xf32, #tpu.memory_space<vmem>>, vector<8x128xf32>,
    %87 = arith.index_cast %70 : i32 to index
    %c0_49 = arith.constant 0 : index
    %88 = vector.load %arg9[%87, %c0_49] : memref<64x128xf32, #tpu.memory_space<vmem>>, vector<8x128xf32>
    tpu.vector_store %arg9[%87, %c0_49], %84 {strides = array<i32>} : memref<64x128xf32, #tpu.memory_space<vmem>>, vector<8x128xf32>,
    %c4_i32 = arith.constant 4 : i32
    %c8_i32_50 = arith.constant 8 : i32
    %89 = arith.muli %c4_i32, %c8_i32_50 : i32
    %90 = tpu.assume_multiple %89, 8 : i32
    %c0_51 = arith.constant 0 : index
    %c0_52 = arith.constant 0 : index
    %91 = vector.load %arg4[%c0_51, %c0_52] : memref<128x128xf32, #tpu.memory_space<vmem>>, vector<128x128xf32>
    %cst_53 = arith.constant dense<0.000000e+00> : vector<8x128xf32>
    %92 = tpu.matmul %84, %91, %cst_53 {dimension_numbers = #tpu.dot_dimension_numbers<[1], [0], [0], [1], [0, 0, 1, 1], [], []>} : vector<8x128xf32>, vector<128x128xf32>, vector<8x128xf32> -> vector<8x128xf32>
    %93 = arith.index_cast %90 : i32 to index
    %c0_54 = arith.constant 0 : index
    %94 = vector.load %arg2[%93, %c0_54] : memref<64x128xf32, #tpu.memory_space<vmem>>, vector<8x128xf32>
    %cst_55 = arith.constant 8.000000e-01 : f32
    %95 = vector.broadcast %cst_55 : f32 to vector<8x128xf32>
    %96 = arith.mulf %95, %83 : vector<8x128xf32>
    %97 = arith.addf %96, %92 : vector<8x128xf32>
    %98 = arith.index_cast %90 : i32 to index
    %c0_56 = arith.constant 0 : index
    %99 = vector.load %arg9[%98, %c0_56] : memref<64x128xf32, #tpu.memory_space<vmem>>, vector<8x128xf32>
    %100 = arith.addf %97, %99 : vector<8x128xf32>
    %cst_57 = arith.constant 2.000000e-01 : f32
    %101 = vector.broadcast %cst_57 : f32 to vector<8x128xf32>
    %102 = arith.mulf %101, %94 : vector<8x128xf32>
    %103 = arith.addf %100, %102 : vector<8x128xf32>
    %104 = math.tanh %103 : vector<8x128xf32>
    %105 = arith.index_cast %90 : i32 to index
    %c0_58 = arith.constant 0 : index
    %106 = vector.load %arg7[%105, %c0_58] : memref<64x128xf32, #tpu.memory_space<vmem>>, vector<8x128xf32>
    tpu.vector_store %arg7[%105, %c0_58], %103 {strides = array<i32>} : memref<64x128xf32, #tpu.memory_space<vmem>>, vector<8x128xf32>,
    %107 = arith.index_cast %90 : i32 to index
    %c0_59 = arith.constant 0 : index
    %108 = vector.load %arg9[%107, %c0_59] : memref<64x128xf32, #tpu.memory_space<vmem>>, vector<8x128xf32>
    tpu.vector_store %arg9[%107, %c0_59], %104 {strides = array<i32>} : memref<64x128xf32, #tpu.memory_space<vmem>>, vector<8x128xf32>,
    %c5_i32 = arith.constant 5 : i32
    %c8_i32_60 = arith.constant 8 : i32
    %109 = arith.muli %c5_i32, %c8_i32_60 : i32
    %110 = tpu.assume_multiple %109, 8 : i32
    %c0_61 = arith.constant 0 : index
    %c0_62 = arith.constant 0 : index
    %111 = vector.load %arg4[%c0_61, %c0_62] : memref<128x128xf32, #tpu.memory_space<vmem>>, vector<128x128xf32>
    %cst_63 = arith.constant dense<0.000000e+00> : vector<8x128xf32>
    %112 = tpu.matmul %104, %111, %cst_63 {dimension_numbers = #tpu.dot_dimension_numbers<[1], [0], [0], [1], [0, 0, 1, 1], [], []>} : vector<8x128xf32>, vector<128x128xf32>, vector<8x128xf32> -> vector<8x128xf32>
    %113 = arith.index_cast %110 : i32 to index
    %c0_64 = arith.constant 0 : index
    %114 = vector.load %arg2[%113, %c0_64] : memref<64x128xf32, #tpu.memory_space<vmem>>, vector<8x128xf32>
    %cst_65 = arith.constant 8.000000e-01 : f32
    %115 = vector.broadcast %cst_65 : f32 to vector<8x128xf32>
    %116 = arith.mulf %115, %103 : vector<8x128xf32>
    %117 = arith.addf %116, %112 : vector<8x128xf32>
    %118 = arith.index_cast %110 : i32 to index
    %c0_66 = arith.constant 0 : index
    %119 = vector.load %arg9[%118, %c0_66] : memref<64x128xf32, #tpu.memory_space<vmem>>, vector<8x128xf32>
    %120 = arith.addf %117, %119 : vector<8x128xf32>
    %cst_67 = arith.constant 2.000000e-01 : f32
    %121 = vector.broadcast %cst_67 : f32 to vector<8x128xf32>
    %122 = arith.mulf %121, %114 : vector<8x128xf32>
    %123 = arith.addf %120, %122 : vector<8x128xf32>
    %124 = math.tanh %123 : vector<8x128xf32>
    %125 = arith.index_cast %110 : i32 to index
    %c0_68 = arith.constant 0 : index
    %126 = vector.load %arg7[%125, %c0_68] : memref<64x128xf32, #tpu.memory_space<vmem>>, vector<8x128xf32>
    tpu.vector_store %arg7[%125, %c0_68], %123 {strides = array<i32>} : memref<64x128xf32, #tpu.memory_space<vmem>>, vector<8x128xf32>,
    %127 = arith.index_cast %110 : i32 to index
    %c0_69 = arith.constant 0 : index
    %128 = vector.load %arg9[%127, %c0_69] : memref<64x128xf32, #tpu.memory_space<vmem>>, vector<8x128xf32>
    tpu.vector_store %arg9[%127, %c0_69], %124 {strides = array<i32>} : memref<64x128xf32, #tpu.memory_space<vmem>>, vector<8x128xf32>,
    %c6_i32 = arith.constant 6 : i32
    %c8_i32_70 = arith.constant 8 : i32
    %129 = arith.muli %c6_i32, %c8_i32_70 : i32
    %130 = tpu.assume_multiple %129, 8 : i32
    %c0_71 = arith.constant 0 : index
    %c0_72 = arith.constant 0 : index
    %131 = vector.load %arg4[%c0_71, %c0_72] : memref<128x128xf32, #tpu.memory_space<vmem>>, vector<128x128xf32>
    %cst_73 = arith.constant dense<0.000000e+00> : vector<8x128xf32>
    %132 = tpu.matmul %124, %131, %cst_73 {dimension_numbers = #tpu.dot_dimension_numbers<[1], [0], [0], [1], [0, 0, 1, 1], [], []>} : vector<8x128xf32>, vector<128x128xf32>, vector<8x128xf32> -> vector<8x128xf32>
    %133 = arith.index_cast %130 : i32 to index
    %c0_74 = arith.constant 0 : index
    %134 = vector.load %arg2[%133, %c0_74] : memref<64x128xf32, #tpu.memory_space<vmem>>, vector<8x128xf32>
    %cst_75 = arith.constant 8.000000e-01 : f32
    %135 = vector.broadcast %cst_75 : f32 to vector<8x128xf32>
    %136 = arith.mulf %135, %123 : vector<8x128xf32>
    %137 = arith.addf %136, %132 : vector<8x128xf32>
    %138 = arith.index_cast %130 : i32 to index
    %c0_76 = arith.constant 0 : index
    %139 = vector.load %arg9[%138, %c0_76] : memref<64x128xf32, #tpu.memory_space<vmem>>, vector<8x128xf32>
    %140 = arith.addf %137, %139 : vector<8x128xf32>
    %cst_77 = arith.constant 2.000000e-01 : f32
    %141 = vector.broadcast %cst_77 : f32 to vector<8x128xf32>
    %142 = arith.mulf %141, %134 : vector<8x128xf32>
    %143 = arith.addf %140, %142 : vector<8x128xf32>
    %144 = math.tanh %143 : vector<8x128xf32>
    %145 = arith.index_cast %130 : i32 to index
    %c0_78 = arith.constant 0 : index
    %146 = vector.load %arg7[%145, %c0_78] : memref<64x128xf32, #tpu.memory_space<vmem>>, vector<8x128xf32>
    tpu.vector_store %arg7[%145, %c0_78], %143 {strides = array<i32>} : memref<64x128xf32, #tpu.memory_space<vmem>>, vector<8x128xf32>,
    %147 = arith.index_cast %130 : i32 to index
    %c0_79 = arith.constant 0 : index
    %148 = vector.load %arg9[%147, %c0_79] : memref<64x128xf32, #tpu.memory_space<vmem>>, vector<8x128xf32>
    tpu.vector_store %arg9[%147, %c0_79], %144 {strides = array<i32>} : memref<64x128xf32, #tpu.memory_space<vmem>>, vector<8x128xf32>,
    %c7_i32 = arith.constant 7 : i32
    %c8_i32_80 = arith.constant 8 : i32
    %149 = arith.muli %c7_i32, %c8_i32_80 : i32
    %150 = tpu.assume_multiple %149, 8 : i32
    %c0_81 = arith.constant 0 : index
    %c0_82 = arith.constant 0 : index
    %151 = vector.load %arg4[%c0_81, %c0_82] : memref<128x128xf32, #tpu.memory_space<vmem>>, vector<128x128xf32>
    %cst_83 = arith.constant dense<0.000000e+00> : vector<8x128xf32>
    %152 = tpu.matmul %144, %151, %cst_83 {dimension_numbers = #tpu.dot_dimension_numbers<[1], [0], [0], [1], [0, 0, 1, 1], [], []>} : vector<8x128xf32>, vector<128x128xf32>, vector<8x128xf32> -> vector<8x128xf32>
    %153 = arith.index_cast %150 : i32 to index
    %c0_84 = arith.constant 0 : index
    %154 = vector.load %arg2[%153, %c0_84] : memref<64x128xf32, #tpu.memory_space<vmem>>, vector<8x128xf32>
    %cst_85 = arith.constant 8.000000e-01 : f32
    %155 = vector.broadcast %cst_85 : f32 to vector<8x128xf32>
    %156 = arith.mulf %155, %143 : vector<8x128xf32>
    %157 = arith.addf %156, %152 : vector<8x128xf32>
    %158 = arith.index_cast %150 : i32 to index
    %c0_86 = arith.constant 0 : index
    %159 = vector.load %arg9[%158, %c0_86] : memref<64x128xf32, #tpu.memory_space<vmem>>, vector<8x128xf32>
    %160 = arith.addf %157, %159 : vector<8x128xf32>
    %cst_87 = arith.constant 2.000000e-01 : f32
    %161 = vector.broadcast %cst_87 : f32 to vector<8x128xf32>
    %162 = arith.mulf %161, %154 : vector<8x128xf32>
    %163 = arith.addf %160, %162 : vector<8x128xf32>
    %164 = math.tanh %163 : vector<8x128xf32>
    %165 = arith.index_cast %150 : i32 to index
    %c0_88 = arith.constant 0 : index
    %166 = vector.load %arg7[%165, %c0_88] : memref<64x128xf32, #tpu.memory_space<vmem>>, vector<8x128xf32>
    tpu.vector_store %arg7[%165, %c0_88], %163 {strides = array<i32>} : memref<64x128xf32, #tpu.memory_space<vmem>>, vector<8x128xf32>,
    %167 = arith.index_cast %150 : i32 to index
    %c0_89 = arith.constant 0 : index
    %168 = vector.load %arg9[%167, %c0_89] : memref<64x128xf32, #tpu.memory_space<vmem>>, vector<8x128xf32>
    tpu.vector_store %arg9[%167, %c0_89], %164 {strides = array<i32>} : memref<64x128xf32, #tpu.memory_space<vmem>>, vector<8x128xf32>,
    %c8_i32_90 = arith.constant 8 : i32
    %c0_91 = arith.constant 0 : index
    %c0_92 = arith.constant 0 : index
    %169 = vector.load %arg10[%c0_91, %c0_92] : memref<8x128xf32, #tpu.memory_space<vmem>>, vector<8x128xf32>
    tpu.vector_store %arg10[%c0_91, %c0_92], %163 {strides = array<i32>} : memref<8x128xf32, #tpu.memory_space<vmem>>, vector<8x128xf32>,
    %c0_93 = arith.constant 0 : index
    %c0_94 = arith.constant 0 : index
    %170 = vector.load %arg11[%c0_93, %c0_94] : memref<8x128xf32, #tpu.memory_space<vmem>>, vector<8x128xf32>
    tpu.vector_store %arg11[%c0_93, %c0_94], %164 {strides = array<i32>} : memref<8x128xf32, #tpu.memory_space<vmem>>, vector<8x128xf32>,
    %c0_95 = arith.constant 0 : index
    %c0_96 = arith.constant 0 : index
    %171 = vector.load %arg9[%c0_95, %c0_96] : memref<64x128xf32, #tpu.memory_space<vmem>>, vector<64x128xf32>
    %c0_97 = arith.constant 0 : index
    %c0_98 = arith.constant 0 : index
    %172 = vector.load %arg5[%c0_97, %c0_98] : memref<128x128xf32, #tpu.memory_space<vmem>>, vector<128x128xf32>
    %cst_99 = arith.constant dense<0.000000e+00> : vector<64x128xf32>
    %173 = tpu.matmul %171, %172, %cst_99 {dimension_numbers = #tpu.dot_dimension_numbers<[1], [0], [0], [1], [0, 0, 1, 1], [], []>} : vector<64x128xf32>, vector<128x128xf32>, vector<64x128xf32> -> vector<64x128xf32>
    %c0_100 = arith.constant 0 : index
    %c0_101 = arith.constant 0 : index
    %174 = vector.load %arg8[%c0_100, %c0_101] : memref<64x128xf32, #tpu.memory_space<vmem>>, vector<64x128xf32>
    tpu.vector_store %arg8[%c0_100, %c0_101], %173 {strides = array<i32>} : memref<64x128xf32, #tpu.memory_space<vmem>>, vector<64x128xf32>,
    return
  }
  func.func @transform_0(%arg0: i32) -> (i32, i32) {
    %c0_i32 = arith.constant 0 : i32
    %c0_i32_0 = arith.constant 0 : i32
    return %arg0, %c0_i32 : i32, i32
  }
  func.func @transform_1(%arg0: i32) -> (i32, i32) {
    %c0_i32 = arith.constant 0 : i32
    %c0_i32_0 = arith.constant 0 : i32
    return %arg0, %c0_i32 : i32, i32
  }
  func.func @transform_2(%arg0: i32) -> (i32, i32) {
    %c0_i32 = arith.constant 0 : i32
    %c0_i32_0 = arith.constant 0 : i32
    %c0_i32_1 = arith.constant 0 : i32
    return %c0_i32, %c0_i32_0 : i32, i32
  }
  func.func @transform_3(%arg0: i32) -> (i32, i32) {
    %c0_i32 = arith.constant 0 : i32
    %c0_i32_0 = arith.constant 0 : i32
    %c0_i32_1 = arith.constant 0 : i32
    return %c0_i32, %c0_i32_0 : i32, i32
  }
  func.func @transform_4(%arg0: i32) -> (i32, i32) {
    %c0_i32 = arith.constant 0 : i32
    %c0_i32_0 = arith.constant 0 : i32
    %c0_i32_1 = arith.constant 0 : i32
    return %c0_i32, %c0_i32_0 : i32, i32
  }
  func.func @transform_5(%arg0: i32) -> (i32, i32) {
    %c0_i32 = arith.constant 0 : i32
    %c0_i32_0 = arith.constant 0 : i32
    %c0_i32_1 = arith.constant 0 : i32
    return %c0_i32, %c0_i32_0 : i32, i32
  }
  func.func @transform_6(%arg0: i32) -> (i32, i32) {
    %c0_i32 = arith.constant 0 : i32
    %c0_i32_0 = arith.constant 0 : i32
    return %arg0, %c0_i32 : i32, i32
  }
  func.func @transform_7(%arg0: i32) -> (i32, i32) {
    %c0_i32 = arith.constant 0 : i32
    %c0_i32_0 = arith.constant 0 : i32
    return %arg0, %c0_i32 : i32, i32
  }
}

</mosaic_0001>

<llo_original>
// kernel: tpu_custom_call.1
$region0: #{tpu_custom_call.1}
  #allocation0 [shape = 'u32[]', space=smem, size = 0x4, offset = 0x4, fixed_abs, tag = 'smem constant byte address 0x4 - core index']
  #allocation1 [shape = 'u32[144,128]{1,0:T(1,128)}', space=vmem, size = 0x12000, scoped, tag = 'internal scratch']
  #allocation2 [shape = 'f32[64,128]{1,0:T(8,128)}', space=vmem, size = 0x8000, scoped, tag = 'scratch operand']
  #allocation3 [shape = 'f32[8,128]{1,0:T(8,128)}', space=vmem, size = 0x1000, scoped, tag = 'scratch operand']
  #allocation4 [shape = 'f32[8,128]{1,0:T(8,128)}', space=vmem, size = 0x1000, scoped, tag = 'scratch operand']
  %s0 = inlined_call_operand.hbm [shape: f32[64,128], index: 0, kind: input, shape index: {}]
  %s1 = inlined_call_operand.hbm [shape: f32[64,128], index: 1, kind: input, shape index: {}]
  %s2 = inlined_call_operand.hbm [shape: f32[128,128], index: 2, kind: input, shape index: {}]
  %s3 = inlined_call_operand.hbm [shape: f32[128,128], index: 3, kind: input, shape index: {}]
  %s4 = inlined_call_operand.hbm [shape: f32[128,128], index: 4, kind: input, shape index: {}]
  %s5 = inlined_call_operand.vmem [shape: f32[8,128], index: 5, kind: input, shape index: {}]
  %s6 = inlined_call_operand.hbm [shape: f32[64,128], index: 6, kind: output, shape index: {0}]
  %s7 = inlined_call_operand.hbm [shape: f32[64,128], index: 7, kind: output, shape index: {1}]
  %8 = xla_tuple %s6, %s7
  %s9 = sld [smem:[#allocation0]]
  $region66: #{tpu_custom_call.1} parent=0
    _
  %s11 = ssub.s32 1, %s9
  %s12 = scalar_select 0, %s11, %s9
  $region1: #{tpu_custom_call.1} parent=0
    #allocation5 [shape = 'u8[32768]{0}', space=vmem, size = 0x8000, scoped, tag = 'input window, operand 0, single buffered']
    #allocation6 [shape = 's32[1]{0}', space=sflag, size = 0x4, scoped, tag = 'scoped memory for tpu_custom_call.1']
    #allocation7 [shape = 's32[1]{0}', space=sflag, size = 0x4, scoped, tag = 'scoped memory for tpu_custom_call.1']
    #allocation8 [shape = 'u8[32768]{0}', space=vmem, size = 0x8000, scoped, tag = 'input window, operand 1, single buffered']
    #allocation9 [shape = 's32[1]{0}', space=sflag, size = 0x4, scoped, tag = 'scoped memory for tpu_custom_call.1']
    #allocation10 [shape = 'u8[65536]{0}', space=vmem, size = 0x10000, scoped, tag = 'input window, operand 2, single buffered']
    #allocation11 [shape = 'u8[65536]{0}', space=vmem, size = 0x10000, scoped, tag = 'input window, operand 3, single buffered']
    #allocation12 [shape = 's32[1]{0}', space=sflag, size = 0x4, scoped, tag = 'scoped memory for tpu_custom_call.1']
    #allocation13 [shape = 'u8[65536]{0}', space=vmem, size = 0x10000, scoped, tag = 'input window, operand 4, single buffered']
    #allocation14 [shape = 'u8[32768]{0}', space=vmem, size = 0x8000, scoped, tag = 'output window, operand 0, single buffered']
    #allocation15 [shape = 'u8[32768]{0}', space=vmem, size = 0x8000, scoped, tag = 'output window, operand 1, single buffered']
    #allocation16 [shape = 's32[1]{0}', space=sflag, size = 0x4, scoped, tag = 'scoped memory for tpu_custom_call.1']
    %13 = vsyncpa [#allocation6], 0
    %14 = vsyncpa [#allocation9], 0
    %15 = vsyncpa [#allocation12], 0
    %16 = vsyncpa [#allocation7], 0
    %17 = vsyncpa [#allocation16], 0
    // Predicated region
    $region2: #{tpu_custom_call.1} parent=1 // pred_check
      _
    $region3: #{tpu_custom_call.1} parent=1 // pred_check_branch
      %19 = sbr.rel (0) target = $region5
    $region4: #{tpu_custom_call.1} parent=1 // pred_region
      %s21 = ssub.s32 1024, 1024
      %22 = vsyncadd [#allocation6], %s21
      %s23 = sshll.u32 [#allocation5], 4
      %s24 = int_to_ptr.vmem [resolvable:$true] %s23
      %29 = dma.hbm_to_vmem [thread:$0]  %s0, 1024, %s24, [#allocation6], 128, 128, 8
    $region5: #{tpu_custom_call.1} parent=1 // pred_fallthru
      _
    // Predicated region
    $region6: #{tpu_custom_call.1} parent=1 // pred_check
      _
    $region7: #{tpu_custom_call.1} parent=1 // pred_check_branch
      %31 = sbr.rel (0) target = $region9
    $region8: #{tpu_custom_call.1} parent=1 // pred_region
      %s33 = ssub.s32 1024, 1024
      %34 = vsyncadd [#allocation9], %s33
      %s35 = sshll.u32 [#allocation8], 4
      %s36 = int_to_ptr.vmem [resolvable:$true] %s35
      %41 = dma.hbm_to_vmem [thread:$0]  %s1, 1024, %s36, [#allocation9], 128, 128, 8
    $region9: #{tpu_custom_call.1} parent=1 // pred_fallthru
      _
    // Predicated region
    $region10: #{tpu_custom_call.1} parent=1 // pred_check
      _
    $region11: #{tpu_custom_call.1} parent=1 // pred_check_branch
      %43 = sbr.rel (0) target = $region13
    $region12: #{tpu_custom_call.1} parent=1 // pred_region
      %s45 = ssub.s32 2048, 2048
      %46 = vsyncadd [#allocation9], %s45
      %s47 = sshll.u32 [#allocation10], 4
      %s48 = int_to_ptr.vmem [resolvable:$true] %s47
      %53 = dma.hbm_to_vmem [thread:$0]  %s2, 2048, %s48, [#allocation9], 128, 128, 8
    $region13: #{tpu_custom_call.1} parent=1 // pred_fallthru
      _
    // Predicated region
    $region14: #{tpu_custom_call.1} parent=1 // pred_check
      _
    $region15: #{tpu_custom_call.1} parent=1 // pred_check_branch
      %55 = sbr.rel (0) target = $region17
    $region16: #{tpu_custom_call.1} parent=1 // pred_region
      %s57 = ssub.s32 2048, 2048
      %58 = vsyncadd [#allocation12], %s57
      %s59 = sshll.u32 [#allocation11], 4
      %s60 = int_to_ptr.vmem [resolvable:$true] %s59
      %65 = dma.hbm_to_vmem [thread:$0]  %s3, 2048, %s60, [#allocation12], 128, 128, 8
    $region17: #{tpu_custom_call.1} parent=1 // pred_fallthru
      _
    // Predicated region
    $region18: #{tpu_custom_call.1} parent=1 // pred_check
      _
    $region19: #{tpu_custom_call.1} parent=1 // pred_check_branch
      %67 = sbr.rel (0) target = $region21
    $region20: #{tpu_custom_call.1} parent=1 // pred_region
      %s69 = ssub.s32 2048, 2048
      %70 = vsyncadd [#allocation12], %s69
      %s71 = sshll.u32 [#allocation13], 4
      %s72 = int_to_ptr.vmem [resolvable:$true] %s71
      %77 = dma.hbm_to_vmem [thread:$0]  %s4, 2048, %s72, [#allocation12], 128, 128, 8
    $region21: #{tpu_custom_call.1} parent=1 // pred_fallthru
      _
    // Predicated region
    $region22: #{tpu_custom_call.1} parent=1 // pred_check
      _
    $region23: #{tpu_custom_call.1} parent=1 // pred_check_branch
      %79 = sbr.rel (0) target = $region25
    $region24: #{tpu_custom_call.1} parent=1 // pred_region
      _
    $region25: #{tpu_custom_call.1} parent=1 // pred_fallthru
      _
    // Predicated region
    $region26: #{tpu_custom_call.1} parent=1 // pred_check
      _
    $region27: #{tpu_custom_call.1} parent=1 // pred_check_branch
      %81 = sbr.rel (0) target = $region29
    $region28: #{tpu_custom_call.1} parent=1 // pred_region
      %82 = dma.done [#allocation6], 1024
    $region29: #{tpu_custom_call.1} parent=1 // pred_fallthru
      _
    // Predicated region
    $region30: #{tpu_custom_call.1} parent=1 // pred_check
      _
    $region31: #{tpu_custom_call.1} parent=1 // pred_check_branch
      %84 = sbr.rel (0) target = $region33
    $region32: #{tpu_custom_call.1} parent=1 // pred_region
      %85 = dma.done [#allocation9], 1024
    $region33: #{tpu_custom_call.1} parent=1 // pred_fallthru
      _
    // Predicated region
    $region34: #{tpu_custom_call.1} parent=1 // pred_check
      _
    $region35: #{tpu_custom_call.1} parent=1 // pred_check_branch
      %87 = sbr.rel (0) target = $region37
    $region36: #{tpu_custom_call.1} parent=1 // pred_region
      %88 = dma.done [#allocation9], 2048
    $region37: #{tpu_custom_call.1} parent=1 // pred_fallthru
      _
    // Predicated region
    $region38: #{tpu_custom_call.1} parent=1 // pred_check
      _
    $region39: #{tpu_custom_call.1} parent=1 // pred_check_branch
      %90 = sbr.rel (0) target = $region41
    $region40: #{tpu_custom_call.1} parent=1 // pred_region
      %91 = dma.done [#allocation12], 2048
    $region41: #{tpu_custom_call.1} parent=1 // pred_fallthru
      _
    // Predicated region
    $region42: #{tpu_custom_call.1} parent=1 // pred_check
      _
    $region43: #{tpu_custom_call.1} parent=1 // pred_check_branch
      %93 = sbr.rel (0) target = $region45
    $region44: #{tpu_custom_call.1} parent=1 // pred_region
      %94 = dma.done [#allocation12], 2048
    $region45: #{tpu_custom_call.1} parent=1 // pred_fallthru
      _
    %p95 = scmp.eq.s32.totalorder 0, 0
    // Predicated region
    $region46: #{tpu_custom_call.1} parent=1 // pred_check
      %p96 = pneg %p95
    $region47: #{tpu_custom_call.1} parent=1 // pred_check_branch
      %98 = sbr.rel (%p96) target = $region49
    $region48: #{tpu_custom_call.1} parent=1 // pred_region
      %v99 = vld [vmem:[%s5] sm:$0xff]
      %100 = vst [vmem:[#allocation3] sm:$0xff] %v99
      %v101 = vtanh.pop %v99
      %102 = vst [vmem:[#allocation4] sm:$0xff] %v101
    $region49: #{tpu_custom_call.1} parent=1 // pred_fallthru
      _
    %v103 = vld [vmem:[#allocation5] sm:$0xff]
    %v104 = vld [vmem:[#allocation5 + $0x8] sm:$0xff]
    %v105 = vld [vmem:[#allocation5 + $0x10] sm:$0xff]
    %v106 = vld [vmem:[#allocation5 + $0x18] sm:$0xff]
    %v107 = vld [vmem:[#allocation5 + $0x20] sm:$0xff]
    %v108 = vld [vmem:[#allocation5 + $0x28] sm:$0xff]
    %v109 = vld [vmem:[#allocation5 + $0x30] sm:$0xff]
    %v110 = vld [vmem:[#allocation5 + $0x38] sm:$0xff]
    %v111 = vld [vmem:[#allocation10] sm:$0xff]
    %v112 = vld [vmem:[#allocation10 + $0x8] sm:$0xff]
    %v113 = vld [vmem:[#allocation10 + $0x10] sm:$0xff]
    %v114 = vld [vmem:[#allocation10 + $0x18] sm:$0xff]
    %v115 = vld [vmem:[#allocation10 + $0x20] sm:$0xff]
    %v116 = vld [vmem:[#allocation10 + $0x28] sm:$0xff]
    %v117 = vld [vmem:[#allocation10 + $0x30] sm:$0xff]
    %v118 = vld [vmem:[#allocation10 + $0x38] sm:$0xff]
    %v119 = vld [vmem:[#allocation10 + $0x40] sm:$0xff]
    %v120 = vld [vmem:[#allocation10 + $0x48] sm:$0xff]
    %v121 = vld [vmem:[#allocation10 + $0x50] sm:$0xff]
    %v122 = vld [vmem:[#allocation10 + $0x58] sm:$0xff]
    %v123 = vld [vmem:[#allocation10 + $0x60] sm:$0xff]
    %v124 = vld [vmem:[#allocation10 + $0x68] sm:$0xff]
    %v125 = vld [vmem:[#allocation10 + $0x70] sm:$0xff]
    %v126 = vld [vmem:[#allocation10 + $0x78] sm:$0xff]
    %127 = vmatprep.subr.mxu0 0.0
    %128 = vmatpush1.msra.mxu0 %v126
    %129 = vmatprep.subr.mxu0 0.0
    %130 = vmatpush1.msra.mxu0 %v125
    %131 = vmatprep.subr.mxu0 0.0
    %132 = vmatpush1.msra.mxu0 %v124
    %133 = vmatprep.subr.mxu0 0.0
    %134 = vmatpush1.msra.mxu0 %v123
    %135 = vmatprep.subr.mxu0 0.0
    %136 = vmatpush1.msra.mxu0 %v122
    %137 = vmatprep.subr.mxu0 0.0
    %138 = vmatpush1.msra.mxu0 %v121
    %139 = vmatprep.subr.mxu0 0.0
    %140 = vmatpush1.msra.mxu0 %v120
    %141 = vmatprep.subr.mxu0 0.0
    %142 = vmatpush1.msra.mxu0 %v119
    %143 = vmatprep.subr.mxu0 0.0
    %144 = vmatpush1.msra.mxu0 %v118
    %145 = vmatprep.subr.mxu0 0.0
    %146 = vmatpush1.msra.mxu0 %v117
    %147 = vmatprep.subr.mxu0 0.0
    %148 = vmatpush1.msra.mxu0 %v116
    %149 = vmatprep.subr.mxu0 0.0
    %150 = vmatpush1.msra.mxu0 %v115
    %151 = vmatprep.subr.mxu0 0.0
    %152 = vmatpush1.msra.mxu0 %v114
    %153 = vmatprep.subr.mxu0 0.0
    %154 = vmatpush1.msra.mxu0 %v113
    %155 = vmatprep.subr.mxu0 0.0
    %156 = vmatpush1.msra.mxu0 %v112
    %157 = vmatprep.subr.mxu0 0.0
    %158 = vmatpush1.msra.mxu0 %v111
    %159 = vmatprep.subr.mxu0 0.0
    %160 = vmatpush2.msra.mxu0 0.0
    %161 = vmatprep.subr.mxu0 0.0
    %162 = vmatpush2.msra.mxu0 0.0
    %163 = vmatprep.subr.mxu0 0.0
    %164 = vmatpush2.msra.mxu0 0.0
    %165 = vmatprep.subr.mxu0 0.0
    %166 = vmatpush2.msra.mxu0 0.0
    %167 = vmatprep.subr.mxu0 0.0
    %168 = vmatpush2.msra.mxu0 0.0
    %169 = vmatprep.subr.mxu0 0.0
    %170 = vmatpush2.msra.mxu0 0.0
    %171 = vmatprep.subr.mxu0 0.0
    %172 = vmatpush2.msra.mxu0 0.0
    %173 = vmatprep.subr.mxu0 0.0
    %174 = vmatpush2.msra.mxu0 0.0
    %175 = vmatprep.subr.mxu0 0.0
    %176 = vmatpush2.msra.mxu0 0.0
    %177 = vmatprep.subr.mxu0 0.0
    %178 = vmatpush2.msra.mxu0 0.0
    %179 = vmatprep.subr.mxu0 0.0
    %180 = vmatpush2.msra.mxu0 0.0
    %181 = vmatprep.subr.mxu0 0.0
    %182 = vmatpush2.msra.mxu0 0.0
    %183 = vmatprep.subr.mxu0 0.0
    %184 = vmatpush2.msra.mxu0 0.0
    %185 = vmatprep.subr.mxu0 0.0
    %186 = vmatpush2.msra.mxu0 0.0
    %187 = vmatprep.subr.mxu0 0.0
    %188 = vmatpush2.msra.mxu0 0.0
    %189 = vmatprep.subr.mxu0 0.0
    %190 = vmatpush2.msra.mxu0 0.0
    %191 = vmatprep.mubr.f32.mxu0 0.0
    %192 = vmatmul.mubr.f32.gmra.mxu0 %v103
    %v193 = vpop.f32.mrf.mxu0
    %v194 = vadd.f32 0.0, %v193
    %v195 = vpop.f32.mrf.mxu0
    %196 = vmatprep.mubr.f32.mxu0 0.0
    %197 = vmatmul.mubr.f32.gmra.mxu0 %v104
    %v198 = vpop.f32.mrf.mxu0
    %v199 = vadd.f32 0.0, %v198
    %v200 = vpop.f32.mrf.mxu0
    %201 = vmatprep.mubr.f32.mxu0 0.0
    %202 = vmatmul.mubr.f32.gmra.mxu0 %v105
    %v203 = vpop.f32.mrf.mxu0
    %v204 = vadd.f32 0.0, %v203
    %v205 = vpop.f32.mrf.mxu0
    %206 = vmatprep.mubr.f32.mxu0 0.0
    %207 = vmatmul.mubr.f32.gmra.mxu0 %v106
    %v208 = vpop.f32.mrf.mxu0
    %v209 = vadd.f32 0.0, %v208
    %v210 = vpop.f32.mrf.mxu0
    %211 = vmatprep.mubr.f32.mxu0 0.0
    %212 = vmatmul.mubr.f32.gmra.mxu0 %v107
    %v213 = vpop.f32.mrf.mxu0
    %v214 = vadd.f32 0.0, %v213
    %v215 = vpop.f32.mrf.mxu0
    %216 = vmatprep.mubr.f32.mxu0 0.0
    %217 = vmatmul.mubr.f32.gmra.mxu0 %v108
    %v218 = vpop.f32.mrf.mxu0
    %v219 = vadd.f32 0.0, %v218
    %v220 = vpop.f32.mrf.mxu0
    %221 = vmatprep.mubr.f32.mxu0 0.0
    %222 = vmatmul.mubr.f32.gmra.mxu0 %v109
    %v223 = vpop.f32.mrf.mxu0
    %v224 = vadd.f32 0.0, %v223
    %v225 = vpop.f32.mrf.mxu0
    %226 = vmatprep.mubr.f32.mxu0 0.0
    %227 = vmatmul.mubr.f32.gmra.mxu0 %v110
    %v228 = vpop.f32.mrf.mxu0
    %v229 = vadd.f32 0.0, %v228
    %v230 = vpop.f32.mrf.mxu0
    %231 = vdwg.mxu0
    %232 = vst [vmem:[#allocation2] sm:$0xff] %v194
    %233 = vst [vmem:[#allocation2 + $0x8] sm:$0xff] %v199
    %234 = vst [vmem:[#allocation2 + $0x10] sm:$0xff] %v204
    %235 = vst [vmem:[#allocation2 + $0x18] sm:$0xff] %v209
    %236 = vst [vmem:[#allocation2 + $0x20] sm:$0xff] %v214
    %237 = vst [vmem:[#allocation2 + $0x28] sm:$0xff] %v219
    %238 = vst [vmem:[#allocation2 + $0x30] sm:$0xff] %v224
    %239 = vst [vmem:[#allocation2 + $0x38] sm:$0xff] %v229
    %v240 = vld [vmem:[#allocation3] sm:$0xff]
    %v241 = vld [vmem:[#allocation4] sm:$0xff]
    %v242 = vld [vmem:[#allocation11] sm:$0xff]
    %v243 = vld [vmem:[#allocation11 + $0x8] sm:$0xff]
    %v244 = vld [vmem:[#allocation11 + $0x10] sm:$0xff]
    %v245 = vld [vmem:[#allocation11 + $0x18] sm:$0xff]
    %v246 = vld [vmem:[#allocation11 + $0x20] sm:$0xff]
    %v247 = vld [vmem:[#allocation11 + $0x28] sm:$0xff]
    %v248 = vld [vmem:[#allocation11 + $0x30] sm:$0xff]
    %v249 = vld [vmem:[#allocation11 + $0x38] sm:$0xff]
    %v250 = vld [vmem:[#allocation11 + $0x40] sm:$0xff]
    %v251 = vld [vmem:[#allocation11 + $0x48] sm:$0xff]
    %v252 = vld [vmem:[#allocation11 + $0x50] sm:$0xff]
    %v253 = vld [vmem:[#allocation11 + $0x58] sm:$0xff]
    %v254 = vld [vmem:[#allocation11 + $0x60] sm:$0xff]
    %v255 = vld [vmem:[#allocation11 + $0x68] sm:$0xff]
    %v256 = vld [vmem:[#allocation11 + $0x70] sm:$0xff]
    %v257 = vld [vmem:[#allocation11 + $0x78] sm:$0xff]
    %258 = vmatprep.subr.mxu0 0.0
    %259 = vmatpush1.msra.mxu0 %v257
    %260 = vmatprep.subr.mxu0 0.0
    %261 = vmatpush1.msra.mxu0 %v256
    %262 = vmatprep.subr.mxu0 0.0
    %263 = vmatpush1.msra.mxu0 %v255
    %264 = vmatprep.subr.mxu0 0.0
    %265 = vmatpush1.msra.mxu0 %v254
    %266 = vmatprep.subr.mxu0 0.0
    %267 = vmatpush1.msra.mxu0 %v253
    %268 = vmatprep.subr.mxu0 0.0
    %269 = vmatpush1.msra.mxu0 %v252
    %270 = vmatprep.subr.mxu0 0.0
    %271 = vmatpush1.msra.mxu0 %v251
    %272 = vmatprep.subr.mxu0 0.0
    %273 = vmatpush1.msra.mxu0 %v250
    %274 = vmatprep.subr.mxu0 0.0
    %275 = vmatpush1.msra.mxu0 %v249
    %276 = vmatprep.subr.mxu0 0.0
    %277 = vmatpush1.msra.mxu0 %v248
    %278 = vmatprep.subr.mxu0 0.0
    %279 = vmatpush1.msra.mxu0 %v247
    %280 = vmatprep.subr.mxu0 0.0
    %281 = vmatpush1.msra.mxu0 %v246
    %282 = vmatprep.subr.mxu0 0.0
    %283 = vmatpush1.msra.mxu0 %v245
    %284 = vmatprep.subr.mxu0 0.0
    %285 = vmatpush1.msra.mxu0 %v244
    %286 = vmatprep.subr.mxu0 0.0
    %287 = vmatpush1.msra.mxu0 %v243
    %288 = vmatprep.subr.mxu0 0.0
    %289 = vmatpush1.msra.mxu0 %v242
    %290 = vmatprep.subr.mxu0 0.0
    %291 = vmatpush2.msra.mxu0 0.0
    %292 = vmatprep.subr.mxu0 0.0
    %293 = vmatpush2.msra.mxu0 0.0
    %294 = vmatprep.subr.mxu0 0.0
    %295 = vmatpush2.msra.mxu0 0.0
    %296 = vmatprep.subr.mxu0 0.0
    %297 = vmatpush2.msra.mxu0 0.0
    %298 = vmatprep.subr.mxu0 0.0
    %299 = vmatpush2.msra.mxu0 0.0
    %300 = vmatprep.subr.mxu0 0.0
    %301 = vmatpush2.msra.mxu0 0.0
    %302 = vmatprep.subr.mxu0 0.0
    %303 = vmatpush2.msra.mxu0 0.0
    %304 = vmatprep.subr.mxu0 0.0
    %305 = vmatpush2.msra.mxu0 0.0
    %306 = vmatprep.subr.mxu0 0.0
    %307 = vmatpush2.msra.mxu0 0.0
    %308 = vmatprep.subr.mxu0 0.0
    %309 = vmatpush2.msra.mxu0 0.0
    %310 = vmatprep.subr.mxu0 0.0
    %311 = vmatpush2.msra.mxu0 0.0
    %312 = vmatprep.subr.mxu0 0.0
    %313 = vmatpush2.msra.mxu0 0.0
    %314 = vmatprep.subr.mxu0 0.0
    %315 = vmatpush2.msra.mxu0 0.0
    %316 = vmatprep.subr.mxu0 0.0
    %317 = vmatpush2.msra.mxu0 0.0
    %318 = vmatprep.subr.mxu0 0.0
    %319 = vmatpush2.msra.mxu0 0.0
    %320 = vmatprep.subr.mxu0 0.0
    %321 = vmatpush2.msra.mxu0 0.0
    %322 = vmatprep.mubr.f32.mxu0 0.0
    %323 = vmatmul.mubr.f32.gmra.mxu0 %v241
    %v324 = vpop.f32.mrf.mxu0
    %v325 = vadd.f32 0.0, %v324
    %v326 = vpop.f32.mrf.mxu0
    %327 = vdwg.mxu0
    %v328 = vld [vmem:[#allocation8] sm:$0xff]
    %v329 = vmul.f32 %v240, 0.8
    %v330 = vadd.f32 %v329, %v325
    %v331 = vld [vmem:[#allocation2] sm:$0xff]
    %v332 = vadd.f32 %v330, %v331
    %v333 = vmul.f32 %v328, 0.2
    %v334 = vadd.f32 %v332, %v333
    %v335 = vtanh.pop %v334
    %336 = vst [vmem:[#allocation14] sm:$0xff] %v334
    %337 = vst [vmem:[#allocation2] sm:$0xff] %v335
    %v338 = vld [vmem:[#allocation11] sm:$0xff]
    %v339 = vld [vmem:[#allocation11 + $0x8] sm:$0xff]
    %v340 = vld [vmem:[#allocation11 + $0x10] sm:$0xff]
    %v341 = vld [vmem:[#allocation11 + $0x18] sm:$0xff]
    %v342 = vld [vmem:[#allocation11 + $0x20] sm:$0xff]
    %v343 = vld [vmem:[#allocation11 + $0x28] sm:$0xff]
    %v344 = vld [vmem:[#allocation11 + $0x30] sm:$0xff]
    %v345 = vld [vmem:[#allocation11 + $0x38] sm:$0xff]
    %v346 = vld [vmem:[#allocation11 + $0x40] sm:$0xff]
    %v347 = vld [vmem:[#allocation11 + $0x48] sm:$0xff]
    %v348 = vld [vmem:[#allocation11 + $0x50] sm:$0xff]
    %v349 = vld [vmem:[#allocation11 + $0x58] sm:$0xff]
    %v350 = vld [vmem:[#allocation11 + $0x60] sm:$0xff]
    %v351 = vld [vmem:[#allocation11 + $0x68] sm:$0xff]
    %v352 = vld [vmem:[#allocation11 + $0x70] sm:$0xff]
    %v353 = vld [vmem:[#allocation11 + $0x78] sm:$0xff]
    %354 = vmatprep.subr.mxu0 0.0
    %355 = vmatpush1.msra.mxu0 %v353
    %356 = vmatprep.subr.mxu0 0.0
    %357 = vmatpush1.msra.mxu0 %v352
    %358 = vmatprep.subr.mxu0 0.0
    %359 = vmatpush1.msra.mxu0 %v351
    %360 = vmatprep.subr.mxu0 0.0
    %361 = vmatpush1.msra.mxu0 %v350
    %362 = vmatprep.subr.mxu0 0.0
    %363 = vmatpush1.msra.mxu0 %v349
    %364 = vmatprep.subr.mxu0 0.0
    %365 = vmatpush1.msra.mxu0 %v348
    %366 = vmatprep.subr.mxu0 0.0
    %367 = vmatpush1.msra.mxu0 %v347
    %368 = vmatprep.subr.mxu0 0.0
    %369 = vmatpush1.msra.mxu0 %v346
    %370 = vmatprep.subr.mxu0 0.0
    %371 = vmatpush1.msra.mxu0 %v345
    %372 = vmatprep.subr.mxu0 0.0
    %373 = vmatpush1.msra.mxu0 %v344
    %374 = vmatprep.subr.mxu0 0.0
    %375 = vmatpush1.msra.mxu0 %v343
    %376 = vmatprep.subr.mxu0 0.0
    %377 = vmatpush1.msra.mxu0 %v342
    %378 = vmatprep.subr.mxu0 0.0
    %379 = vmatpush1.msra.mxu0 %v341
    %380 = vmatprep.subr.mxu0 0.0
    %381 = vmatpush1.msra.mxu0 %v340
    %382 = vmatprep.subr.mxu0 0.0
    %383 = vmatpush1.msra.mxu0 %v339
    %384 = vmatprep.subr.mxu0 0.0
    %385 = vmatpush1.msra.mxu0 %v338
    %386 = vmatprep.subr.mxu0 0.0
    %387 = vmatpush2.msra.mxu0 0.0
    %388 = vmatprep.subr.mxu0 0.0
    %389 = vmatpush2.msra.mxu0 0.0
    %390 = vmatprep.subr.mxu0 0.0
    %391 = vmatpush2.msra.mxu0 0.0
    %392 = vmatprep.subr.mxu0 0.0
    %393 = vmatpush2.msra.mxu0 0.0
    %394 = vmatprep.subr.mxu0 0.0
    %395 = vmatpush2.msra.mxu0 0.0
    %396 = vmatprep.subr.mxu0 0.0
    %397 = vmatpush2.msra.mxu0 0.0
    %398 = vmatprep.subr.mxu0 0.0
    %399 = vmatpush2.msra.mxu0 0.0
    %400 = vmatprep.subr.mxu0 0.0
    %401 = vmatpush2.msra.mxu0 0.0
    %402 = vmatprep.subr.mxu0 0.0
    %403 = vmatpush2.msra.mxu0 0.0
    %404 = vmatprep.subr.mxu0 0.0
    %405 = vmatpush2.msra.mxu0 0.0
    %406 = vmatprep.subr.mxu0 0.0
    %407 = vmatpush2.msra.mxu0 0.0
    %408 = vmatprep.subr.mxu0 0.0
    %409 = vmatpush2.msra.mxu0 0.0
    %410 = vmatprep.subr.mxu0 0.0
    %411 = vmatpush2.msra.mxu0 0.0
    %412 = vmatprep.subr.mxu0 0.0
    %413 = vmatpush2.msra.mxu0 0.0
    %414 = vmatprep.subr.mxu0 0.0
    %415 = vmatpush2.msra.mxu0 0.0
    %416 = vmatprep.subr.mxu0 0.0
    %417 = vmatpush2.msra.mxu0 0.0
    %418 = vmatprep.mubr.f32.mxu0 0.0
    %419 = vmatmul.mubr.f32.gmra.mxu0 %v335
    %v420 = vpop.f32.mrf.mxu0
    %v421 = vadd.f32 0.0, %v420
    %v422 = vpop.f32.mrf.mxu0
    %423 = vdwg.mxu0
    %s424 = scalar_lea.vmem [#allocation8], 8
    %v425 = vld [vmem:[%s424] sm:$0xff]
    %v426 = vmul.f32 %v334, 0.8
    %v427 = vadd.f32 %v426, %v421
    %s428 = scalar_lea.vmem [#allocation2], 8
    %v429 = vld [vmem:[%s428] sm:$0xff]
    %v430 = vadd.f32 %v427, %v429
    %v431 = vmul.f32 %v425, 0.2
    %v432 = vadd.f32 %v430, %v431
    %v433 = vtanh.pop %v432
    %s434 = scalar_lea.vmem [#allocation14], 8
    %435 = vst [vmem:[%s434] sm:$0xff] %v432
    %436 = vst [vmem:[%s428] sm:$0xff] %v433
    %v437 = vld [vmem:[#allocation11] sm:$0xff]
    %v438 = vld [vmem:[#allocation11 + $0x8] sm:$0xff]
    %v439 = vld [vmem:[#allocation11 + $0x10] sm:$0xff]
    %v440 = vld [vmem:[#allocation11 + $0x18] sm:$0xff]
    %v441 = vld [vmem:[#allocation11 + $0x20] sm:$0xff]
    %v442 = vld [vmem:[#allocation11 + $0x28] sm:$0xff]
    %v443 = vld [vmem:[#allocation11 + $0x30] sm:$0xff]
    %v444 = vld [vmem:[#allocation11 + $0x38] sm:$0xff]
    %v445 = vld [vmem:[#allocation11 + $0x40] sm:$0xff]
    %v446 = vld [vmem:[#allocation11 + $0x48] sm:$0xff]
    %v447 = vld [vmem:[#allocation11 + $0x50] sm:$0xff]
    %v448 = vld [vmem:[#allocation11 + $0x58] sm:$0xff]
    %v449 = vld [vmem:[#allocation11 + $0x60] sm:$0xff]
    %v450 = vld [vmem:[#allocation11 + $0x68] sm:$0xff]
    %v451 = vld [vmem:[#allocation11 + $0x70] sm:$0xff]
    %v452 = vld [vmem:[#allocation11 + $0x78] sm:$0xff]
    %453 = vmatprep.subr.mxu0 0.0
    %454 = vmatpush1.msra.mxu0 %v452
    %455 = vmatprep.subr.mxu0 0.0
    %456 = vmatpush1.msra.mxu0 %v451
    %457 = vmatprep.subr.mxu0 0.0
    %458 = vmatpush1.msra.mxu0 %v450
    %459 = vmatprep.subr.mxu0 0.0
    %460 = vmatpush1.msra.mxu0 %v449
    %461 = vmatprep.subr.mxu0 0.0
    %462 = vmatpush1.msra.mxu0 %v448
    %463 = vmatprep.subr.mxu0 0.0
    %464 = vmatpush1.msra.mxu0 %v447
    %465 = vmatprep.subr.mxu0 0.0
    %466 = vmatpush1.msra.mxu0 %v446
    %467 = vmatprep.subr.mxu0 0.0
    %468 = vmatpush1.msra.mxu0 %v445
    %469 = vmatprep.subr.mxu0 0.0
    %470 = vmatpush1.msra.mxu0 %v444
    %471 = vmatprep.subr.mxu0 0.0
    %472 = vmatpush1.msra.mxu0 %v443
    %473 = vmatprep.subr.mxu0 0.0
    %474 = vmatpush1.msra.mxu0 %v442
    %475 = vmatprep.subr.mxu0 0.0
    %476 = vmatpush1.msra.mxu0 %v441
    %477 = vmatprep.subr.mxu0 0.0
    %478 = vmatpush1.msra.mxu0 %v440
    %479 = vmatprep.subr.mxu0 0.0
    %480 = vmatpush1.msra.mxu0 %v439
    %481 = vmatprep.subr.mxu0 0.0
    %482 = vmatpush1.msra.mxu0 %v438
    %483 = vmatprep.subr.mxu0 0.0
    %484 = vmatpush1.msra.mxu0 %v437
    %485 = vmatprep.subr.mxu0 0.0
    %486 = vmatpush2.msra.mxu0 0.0
    %487 = vmatprep.subr.mxu0 0.0
    %488 = vmatpush2.msra.mxu0 0.0
    %489 = vmatprep.subr.mxu0 0.0
    %490 = vmatpush2.msra.mxu0 0.0
    %491 = vmatprep.subr.mxu0 0.0
    %492 = vmatpush2.msra.mxu0 0.0
    %493 = vmatprep.subr.mxu0 0.0
    %494 = vmatpush2.msra.mxu0 0.0
    %495 = vmatprep.subr.mxu0 0.0
    %496 = vmatpush2.msra.mxu0 0.0
    %497 = vmatprep.subr.mxu0 0.0
    %498 = vmatpush2.msra.mxu0 0.0
    %499 = vmatprep.subr.mxu0 0.0
    %500 = vmatpush2.msra.mxu0 0.0
    %501 = vmatprep.subr.mxu0 0.0
    %502 = vmatpush2.msra.mxu0 0.0
    %503 = vmatprep.subr.mxu0 0.0
    %504 = vmatpush2.msra.mxu0 0.0
    %505 = vmatprep.subr.mxu0 0.0
    %506 = vmatpush2.msra.mxu0 0.0
    %507 = vmatprep.subr.mxu0 0.0
    %508 = vmatpush2.msra.mxu0 0.0
    %509 = vmatprep.subr.mxu0 0.0
    %510 = vmatpush2.msra.mxu0 0.0
    %511 = vmatprep.subr.mxu0 0.0
    %512 = vmatpush2.msra.mxu0 0.0
    %513 = vmatprep.subr.mxu0 0.0
    %514 = vmatpush2.msra.mxu0 0.0
    %515 = vmatprep.subr.mxu0 0.0
    %516 = vmatpush2.msra.mxu0 0.0
    %517 = vmatprep.mubr.f32.mxu0 0.0
    %518 = vmatmul.mubr.f32.gmra.mxu0 %v433
    %v519 = vpop.f32.mrf.mxu0
    %v520 = vadd.f32 0.0, %v519
    %v521 = vpop.f32.mrf.mxu0
    %522 = vdwg.mxu0
    %s523 = scalar_lea.vmem [#allocation8], 16
    %v524 = vld [vmem:[%s523] sm:$0xff]
    %v525 = vmul.f32 %v432, 0.8
    %v526 = vadd.f32 %v525, %v520
    %s527 = scalar_lea.vmem [#allocation2], 16
    %v528 = vld [vmem:[%s527] sm:$0xff]
    %v529 = vadd.f32 %v526, %v528
    %v530 = vmul.f32 %v524, 0.2
    %v531 = vadd.f32 %v529, %v530
    %v532 = vtanh.pop %v531
    %s533 = scalar_lea.vmem [#allocation14], 16
    %534 = vst [vmem:[%s533] sm:$0xff] %v531
    %535 = vst [vmem:[%s527] sm:$0xff] %v532
    %v536 = vld [vmem:[#allocation11] sm:$0xff]
    %v537 = vld [vmem:[#allocation11 + $0x8] sm:$0xff]
    %v538 = vld [vmem:[#allocation11 + $0x10] sm:$0xff]
    %v539 = vld [vmem:[#allocation11 + $0x18] sm:$0xff]
    %v540 = vld [vmem:[#allocation11 + $0x20] sm:$0xff]
    %v541 = vld [vmem:[#allocation11 + $0x28] sm:$0xff]
    %v542 = vld [vmem:[#allocation11 + $0x30] sm:$0xff]
    %v543 = vld [vmem:[#allocation11 + $0x38] sm:$0xff]
    %v544 = vld [vmem:[#allocation11 + $0x40] sm:$0xff]
    %v545 = vld [vmem:[#allocation11 + $0x48] sm:$0xff]
    %v546 = vld [vmem:[#allocation11 + $0x50] sm:$0xff]
    %v547 = vld [vmem:[#allocation11 + $0x58] sm:$0xff]
    %v548 = vld [vmem:[#allocation11 + $0x60] sm:$0xff]
    %v549 = vld [vmem:[#allocation11 + $0x68] sm:$0xff]
    %v550 = vld [vmem:[#allocation11 + $0x70] sm:$0xff]
    %v551 = vld [vmem:[#allocation11 + $0x78] sm:$0xff]
    %552 = vmatprep.subr.mxu0 0.0
    %553 = vmatpush1.msra.mxu0 %v551
    %554 = vmatprep.subr.mxu0 0.0
    %555 = vmatpush1.msra.mxu0 %v550
    %556 = vmatprep.subr.mxu0 0.0
    %557 = vmatpush1.msra.mxu0 %v549
    %558 = vmatprep.subr.mxu0 0.0
    %559 = vmatpush1.msra.mxu0 %v548
    %560 = vmatprep.subr.mxu0 0.0
    %561 = vmatpush1.msra.mxu0 %v547
    %562 = vmatprep.subr.mxu0 0.0
    %563 = vmatpush1.msra.mxu0 %v546
    %564 = vmatprep.subr.mxu0 0.0
    %565 = vmatpush1.msra.mxu0 %v545
    %566 = vmatprep.subr.mxu0 0.0
    %567 = vmatpush1.msra.mxu0 %v544
    %568 = vmatprep.subr.mxu0 0.0
    %569 = vmatpush1.msra.mxu0 %v543
    %570 = vmatprep.subr.mxu0 0.0
    %571 = vmatpush1.msra.mxu0 %v542
    %572 = vmatprep.subr.mxu0 0.0
    %573 = vmatpush1.msra.mxu0 %v541
    %574 = vmatprep.subr.mxu0 0.0
    %575 = vmatpush1.msra.mxu0 %v540
    %576 = vmatprep.subr.mxu0 0.0
    %577 = vmatpush1.msra.mxu0 %v539
    %578 = vmatprep.subr.mxu0 0.0
    %579 = vmatpush1.msra.mxu0 %v538
    %580 = vmatprep.subr.mxu0 0.0
    %581 = vmatpush1.msra.mxu0 %v537
    %582 = vmatprep.subr.mxu0 0.0
    %583 = vmatpush1.msra.mxu0 %v536
    %584 = vmatprep.subr.mxu0 0.0
    %585 = vmatpush2.msra.mxu0 0.0
    %586 = vmatprep.subr.mxu0 0.0
    %587 = vmatpush2.msra.mxu0 0.0
    %588 = vmatprep.subr.mxu0 0.0
    %589 = vmatpush2.msra.mxu0 0.0
    %590 = vmatprep.subr.mxu0 0.0
    %591 = vmatpush2.msra.mxu0 0.0
    %592 = vmatprep.subr.mxu0 0.0
    %593 = vmatpush2.msra.mxu0 0.0
    %594 = vmatprep.subr.mxu0 0.0
    %595 = vmatpush2.msra.mxu0 0.0
    %596 = vmatprep.subr.mxu0 0.0
    %597 = vmatpush2.msra.mxu0 0.0
    %598 = vmatprep.subr.mxu0 0.0
    %599 = vmatpush2.msra.mxu0 0.0
    %600 = vmatprep.subr.mxu0 0.0
    %601 = vmatpush2.msra.mxu0 0.0
    %602 = vmatprep.subr.mxu0 0.0
    %603 = vmatpush2.msra.mxu0 0.0
    %604 = vmatprep.subr.mxu0 0.0
    %605 = vmatpush2.msra.mxu0 0.0
    %606 = vmatprep.subr.mxu0 0.0
    %607 = vmatpush2.msra.mxu0 0.0
    %608 = vmatprep.subr.mxu0 0.0
    %609 = vmatpush2.msra.mxu0 0.0
    %610 = vmatprep.subr.mxu0 0.0
    %611 = vmatpush2.msra.mxu0 0.0
    %612 = vmatprep.subr.mxu0 0.0
    %613 = vmatpush2.msra.mxu0 0.0
    %614 = vmatprep.subr.mxu0 0.0
    %615 = vmatpush2.msra.mxu0 0.0
    %616 = vmatprep.mubr.f32.mxu0 0.0
    %617 = vmatmul.mubr.f32.gmra.mxu0 %v532
    %v618 = vpop.f32.mrf.mxu0
    %v619 = vadd.f32 0.0, %v618
    %v620 = vpop.f32.mrf.mxu0
    %621 = vdwg.mxu0
    %s622 = scalar_lea.vmem [#allocation8], 24
    %v623 = vld [vmem:[%s622] sm:$0xff]
    %v624 = vmul.f32 %v531, 0.8
    %v625 = vadd.f32 %v624, %v619
    %s626 = scalar_lea.vmem [#allocation2], 24
    %v627 = vld [vmem:[%s626] sm:$0xff]
    %v628 = vadd.f32 %v625, %v627
    %v629 = vmul.f32 %v623, 0.2
    %v630 = vadd.f32 %v628, %v629
    %v631 = vtanh.pop %v630
    %s632 = scalar_lea.vmem [#allocation14], 24
    %633 = vst [vmem:[%s632] sm:$0xff] %v630
    %634 = vst [vmem:[%s626] sm:$0xff] %v631
    %v635 = vld [vmem:[#allocation11] sm:$0xff]
    %v636 = vld [vmem:[#allocation11 + $0x8] sm:$0xff]
    %v637 = vld [vmem:[#allocation11 + $0x10] sm:$0xff]
    %v638 = vld [vmem:[#allocation11 + $0x18] sm:$0xff]
    %v639 = vld [vmem:[#allocation11 + $0x20] sm:$0xff]
    %v640 = vld [vmem:[#allocation11 + $0x28] sm:$0xff]
    %v641 = vld [vmem:[#allocation11 + $0x30] sm:$0xff]
    %v642 = vld [vmem:[#allocation11 + $0x38] sm:$0xff]
    %v643 = vld [vmem:[#allocation11 + $0x40] sm:$0xff]
    %v644 = vld [vmem:[#allocation11 + $0x48] sm:$0xff]
    %v645 = vld [vmem:[#allocation11 + $0x50] sm:$0xff]
    %v646 = vld [vmem:[#allocation11 + $0x58] sm:$0xff]
    %v647 = vld [vmem:[#allocation11 + $0x60] sm:$0xff]
    %v648 = vld [vmem:[#allocation11 + $0x68] sm:$0xff]
    %v649 = vld [vmem:[#allocation11 + $0x70] sm:$0xff]
    %v650 = vld [vmem:[#allocation11 + $0x78] sm:$0xff]
    %651 = vmatprep.subr.mxu0 0.0
    %652 = vmatpush1.msra.mxu0 %v650
    %653 = vmatprep.subr.mxu0 0.0
    %654 = vmatpush1.msra.mxu0 %v649
    %655 = vmatprep.subr.mxu0 0.0
    %656 = vmatpush1.msra.mxu0 %v648
    %657 = vmatprep.subr.mxu0 0.0
    %658 = vmatpush1.msra.mxu0 %v647
    %659 = vmatprep.subr.mxu0 0.0
    %660 = vmatpush1.msra.mxu0 %v646
    %661 = vmatprep.subr.mxu0 0.0
    %662 = vmatpush1.msra.mxu0 %v645
    %663 = vmatprep.subr.mxu0 0.0
    %664 = vmatpush1.msra.mxu0 %v644
    %665 = vmatprep.subr.mxu0 0.0
    %666 = vmatpush1.msra.mxu0 %v643
    %667 = vmatprep.subr.mxu0 0.0
    %668 = vmatpush1.msra.mxu0 %v642
    %669 = vmatprep.subr.mxu0 0.0
    %670 = vmatpush1.msra.mxu0 %v641
    %671 = vmatprep.subr.mxu0 0.0
    %672 = vmatpush1.msra.mxu0 %v640
    %673 = vmatprep.subr.mxu0 0.0
    %674 = vmatpush1.msra.mxu0 %v639
    %675 = vmatprep.subr.mxu0 0.0
    %676 = vmatpush1.msra.mxu0 %v638
    %677 = vmatprep.subr.mxu0 0.0
    %678 = vmatpush1.msra.mxu0 %v637
    %679 = vmatprep.subr.mxu0 0.0
    %680 = vmatpush1.msra.mxu0 %v636
    %681 = vmatprep.subr.mxu0 0.0
    %682 = vmatpush1.msra.mxu0 %v635
    %683 = vmatprep.subr.mxu0 0.0
    %684 = vmatpush2.msra.mxu0 0.0
    %685 = vmatprep.subr.mxu0 0.0
    %686 = vmatpush2.msra.mxu0 0.0
    %687 = vmatprep.subr.mxu0 0.0
    %688 = vmatpush2.msra.mxu0 0.0
    %689 = vmatprep.subr.mxu0 0.0
    %690 = vmatpush2.msra.mxu0 0.0
    %691 = vmatprep.subr.mxu0 0.0
    %692 = vmatpush2.msra.mxu0 0.0
    %693 = vmatprep.subr.mxu0 0.0
    %694 = vmatpush2.msra.mxu0 0.0
    %695 = vmatprep.subr.mxu0 0.0
    %696 = vmatpush2.msra.mxu0 0.0
    %697 = vmatprep.subr.mxu0 0.0
    %698 = vmatpush2.msra.mxu0 0.0
    %699 = vmatprep.subr.mxu0 0.0
    %700 = vmatpush2.msra.mxu0 0.0
    %701 = vmatprep.subr.mxu0 0.0
    %702 = vmatpush2.msra.mxu0 0.0
    %703 = vmatprep.subr.mxu0 0.0
    %704 = vmatpush2.msra.mxu0 0.0
    %705 = vmatprep.subr.mxu0 0.0
    %706 = vmatpush2.msra.mxu0 0.0
    %707 = vmatprep.subr.mxu0 0.0
    %708 = vmatpush2.msra.mxu0 0.0
    %709 = vmatprep.subr.mxu0 0.0
    %710 = vmatpush2.msra.mxu0 0.0
    %711 = vmatprep.subr.mxu0 0.0
    %712 = vmatpush2.msra.mxu0 0.0
    %713 = vmatprep.subr.mxu0 0.0
    %714 = vmatpush2.msra.mxu0 0.0
    %715 = vmatprep.mubr.f32.mxu0 0.0
    %716 = vmatmul.mubr.f32.gmra.mxu0 %v631
    %v717 = vpop.f32.mrf.mxu0
    %v718 = vadd.f32 0.0, %v717
    %v719 = vpop.f32.mrf.mxu0
    %720 = vdwg.mxu0
    %s721 = scalar_lea.vmem [#allocation8], 32
    %v722 = vld [vmem:[%s721] sm:$0xff]
    %v723 = vmul.f32 %v630, 0.8
    %v724 = vadd.f32 %v723, %v718
    %s725 = scalar_lea.vmem [#allocation2], 32
    %v726 = vld [vmem:[%s725] sm:$0xff]
    %v727 = vadd.f32 %v724, %v726
    %v728 = vmul.f32 %v722, 0.2
    %v729 = vadd.f32 %v727, %v728
    %v730 = vtanh.pop %v729
    %s731 = scalar_lea.vmem [#allocation14], 32
    %732 = vst [vmem:[%s731] sm:$0xff] %v729
    %733 = vst [vmem:[%s725] sm:$0xff] %v730
    %v734 = vld [vmem:[#allocation11] sm:$0xff]
    %v735 = vld [vmem:[#allocation11 + $0x8] sm:$0xff]
    %v736 = vld [vmem:[#allocation11 + $0x10] sm:$0xff]
    %v737 = vld [vmem:[#allocation11 + $0x18] sm:$0xff]
    %v738 = vld [vmem:[#allocation11 + $0x20] sm:$0xff]
    %v739 = vld [vmem:[#allocation11 + $0x28] sm:$0xff]
    %v740 = vld [vmem:[#allocation11 + $0x30] sm:$0xff]
    %v741 = vld [vmem:[#allocation11 + $0x38] sm:$0xff]
    %v742 = vld [vmem:[#allocation11 + $0x40] sm:$0xff]
    %v743 = vld [vmem:[#allocation11 + $0x48] sm:$0xff]
    %v744 = vld [vmem:[#allocation11 + $0x50] sm:$0xff]
    %v745 = vld [vmem:[#allocation11 + $0x58] sm:$0xff]
    %v746 = vld [vmem:[#allocation11 + $0x60] sm:$0xff]
    %v747 = vld [vmem:[#allocation11 + $0x68] sm:$0xff]
    %v748 = vld [vmem:[#allocation11 + $0x70] sm:$0xff]
    %v749 = vld [vmem:[#allocation11 + $0x78] sm:$0xff]
    %750 = vmatprep.subr.mxu0 0.0
    %751 = vmatpush1.msra.mxu0 %v749
    %752 = vmatprep.subr.mxu0 0.0
    %753 = vmatpush1.msra.mxu0 %v748
    %754 = vmatprep.subr.mxu0 0.0
    %755 = vmatpush1.msra.mxu0 %v747
    %756 = vmatprep.subr.mxu0 0.0
    %757 = vmatpush1.msra.mxu0 %v746
    %758 = vmatprep.subr.mxu0 0.0
    %759 = vmatpush1.msra.mxu0 %v745
    %760 = vmatprep.subr.mxu0 0.0
    %761 = vmatpush1.msra.mxu0 %v744
    %762 = vmatprep.subr.mxu0 0.0
    %763 = vmatpush1.msra.mxu0 %v743
    %764 = vmatprep.subr.mxu0 0.0
    %765 = vmatpush1.msra.mxu0 %v742
    %766 = vmatprep.subr.mxu0 0.0
    %767 = vmatpush1.msra.mxu0 %v741
    %768 = vmatprep.subr.mxu0 0.0
    %769 = vmatpush1.msra.mxu0 %v740
    %770 = vmatprep.subr.mxu0 0.0
    %771 = vmatpush1.msra.mxu0 %v739
    %772 = vmatprep.subr.mxu0 0.0
    %773 = vmatpush1.msra.mxu0 %v738
    %774 = vmatprep.subr.mxu0 0.0
    %775 = vmatpush1.msra.mxu0 %v737
    %776 = vmatprep.subr.mxu0 0.0
    %777 = vmatpush1.msra.mxu0 %v736
    %778 = vmatprep.subr.mxu0 0.0
    %779 = vmatpush1.msra.mxu0 %v735
    %780 = vmatprep.subr.mxu0 0.0
    %781 = vmatpush1.msra.mxu0 %v734
    %782 = vmatprep.subr.mxu0 0.0
    %783 = vmatpush2.msra.mxu0 0.0
    %784 = vmatprep.subr.mxu0 0.0
    %785 = vmatpush2.msra.mxu0 0.0
    %786 = vmatprep.subr.mxu0 0.0
    %787 = vmatpush2.msra.mxu0 0.0
    %788 = vmatprep.subr.mxu0 0.0
    %789 = vmatpush2.msra.mxu0 0.0
    %790 = vmatprep.subr.mxu0 0.0
    %791 = vmatpush2.msra.mxu0 0.0
    %792 = vmatprep.subr.mxu0 0.0
    %793 = vmatpush2.msra.mxu0 0.0
    %794 = vmatprep.subr.mxu0 0.0
    %795 = vmatpush2.msra.mxu0 0.0
    %796 = vmatprep.subr.mxu0 0.0
    %797 = vmatpush2.msra.mxu0 0.0
    %798 = vmatprep.subr.mxu0 0.0
    %799 = vmatpush2.msra.mxu0 0.0
    %800 = vmatprep.subr.mxu0 0.0
    %801 = vmatpush2.msra.mxu0 0.0
    %802 = vmatprep.subr.mxu0 0.0
    %803 = vmatpush2.msra.mxu0 0.0
    %804 = vmatprep.subr.mxu0 0.0
    %805 = vmatpush2.msra.mxu0 0.0
    %806 = vmatprep.subr.mxu0 0.0
    %807 = vmatpush2.msra.mxu0 0.0
    %808 = vmatprep.subr.mxu0 0.0
    %809 = vmatpush2.msra.mxu0 0.0
    %810 = vmatprep.subr.mxu0 0.0
    %811 = vmatpush2.msra.mxu0 0.0
    %812 = vmatprep.subr.mxu0 0.0
    %813 = vmatpush2.msra.mxu0 0.0
    %814 = vmatprep.mubr.f32.mxu0 0.0
    %815 = vmatmul.mubr.f32.gmra.mxu0 %v730
    %v816 = vpop.f32.mrf.mxu0
    %v817 = vadd.f32 0.0, %v816
    %v818 = vpop.f32.mrf.mxu0
    %819 = vdwg.mxu0
    %s820 = scalar_lea.vmem [#allocation8], 40
    %v821 = vld [vmem:[%s820] sm:$0xff]
    %v822 = vmul.f32 %v729, 0.8
    %v823 = vadd.f32 %v822, %v817
    %s824 = scalar_lea.vmem [#allocation2], 40
    %v825 = vld [vmem:[%s824] sm:$0xff]
    %v826 = vadd.f32 %v823, %v825
    %v827 = vmul.f32 %v821, 0.2
    %v828 = vadd.f32 %v826, %v827
    %v829 = vtanh.pop %v828
    %s830 = scalar_lea.vmem [#allocation14], 40
    %831 = vst [vmem:[%s830] sm:$0xff] %v828
    %832 = vst [vmem:[%s824] sm:$0xff] %v829
    %v833 = vld [vmem:[#allocation11] sm:$0xff]
    %v834 = vld [vmem:[#allocation11 + $0x8] sm:$0xff]
    %v835 = vld [vmem:[#allocation11 + $0x10] sm:$0xff]
    %v836 = vld [vmem:[#allocation11 + $0x18] sm:$0xff]
    %v837 = vld [vmem:[#allocation11 + $0x20] sm:$0xff]
    %v838 = vld [vmem:[#allocation11 + $0x28] sm:$0xff]
    %v839 = vld [vmem:[#allocation11 + $0x30] sm:$0xff]
    %v840 = vld [vmem:[#allocation11 + $0x38] sm:$0xff]
    %v841 = vld [vmem:[#allocation11 + $0x40] sm:$0xff]
    %v842 = vld [vmem:[#allocation11 + $0x48] sm:$0xff]
    %v843 = vld [vmem:[#allocation11 + $0x50] sm:$0xff]
    %v844 = vld [vmem:[#allocation11 + $0x58] sm:$0xff]
    %v845 = vld [vmem:[#allocation11 + $0x60] sm:$0xff]
    %v846 = vld [vmem:[#allocation11 + $0x68] sm:$0xff]
    %v847 = vld [vmem:[#allocation11 + $0x70] sm:$0xff]
    %v848 = vld [vmem:[#allocation11 + $0x78] sm:$0xff]
    %849 = vmatprep.subr.mxu0 0.0
    %850 = vmatpush1.msra.mxu0 %v848
    %851 = vmatprep.subr.mxu0 0.0
    %852 = vmatpush1.msra.mxu0 %v847
    %853 = vmatprep.subr.mxu0 0.0
    %854 = vmatpush1.msra.mxu0 %v846
    %855 = vmatprep.subr.mxu0 0.0
    %856 = vmatpush1.msra.mxu0 %v845
    %857 = vmatprep.subr.mxu0 0.0
    %858 = vmatpush1.msra.mxu0 %v844
    %859 = vmatprep.subr.mxu0 0.0
    %860 = vmatpush1.msra.mxu0 %v843
    %861 = vmatprep.subr.mxu0 0.0
    %862 = vmatpush1.msra.mxu0 %v842
    %863 = vmatprep.subr.mxu0 0.0
    %864 = vmatpush1.msra.mxu0 %v841
    %865 = vmatprep.subr.mxu0 0.0
    %866 = vmatpush1.msra.mxu0 %v840
    %867 = vmatprep.subr.mxu0 0.0
    %868 = vmatpush1.msra.mxu0 %v839
    %869 = vmatprep.subr.mxu0 0.0
    %870 = vmatpush1.msra.mxu0 %v838
    %871 = vmatprep.subr.mxu0 0.0
    %872 = vmatpush1.msra.mxu0 %v837
    %873 = vmatprep.subr.mxu0 0.0
    %874 = vmatpush1.msra.mxu0 %v836
    %875 = vmatprep.subr.mxu0 0.0
    %876 = vmatpush1.msra.mxu0 %v835
    %877 = vmatprep.subr.mxu0 0.0
    %878 = vmatpush1.msra.mxu0 %v834
    %879 = vmatprep.subr.mxu0 0.0
    %880 = vmatpush1.msra.mxu0 %v833
    %881 = vmatprep.subr.mxu0 0.0
    %882 = vmatpush2.msra.mxu0 0.0
    %883 = vmatprep.subr.mxu0 0.0
    %884 = vmatpush2.msra.mxu0 0.0
    %885 = vmatprep.subr.mxu0 0.0
    %886 = vmatpush2.msra.mxu0 0.0
    %887 = vmatprep.subr.mxu0 0.0
    %888 = vmatpush2.msra.mxu0 0.0
    %889 = vmatprep.subr.mxu0 0.0
    %890 = vmatpush2.msra.mxu0 0.0
    %891 = vmatprep.subr.mxu0 0.0
    %892 = vmatpush2.msra.mxu0 0.0
    %893 = vmatprep.subr.mxu0 0.0
    %894 = vmatpush2.msra.mxu0 0.0
    %895 = vmatprep.subr.mxu0 0.0
    %896 = vmatpush2.msra.mxu0 0.0
    %897 = vmatprep.subr.mxu0 0.0
    %898 = vmatpush2.msra.mxu0 0.0
    %899 = vmatprep.subr.mxu0 0.0
    %900 = vmatpush2.msra.mxu0 0.0
    %901 = vmatprep.subr.mxu0 0.0
    %902 = vmatpush2.msra.mxu0 0.0
    %903 = vmatprep.subr.mxu0 0.0
    %904 = vmatpush2.msra.mxu0 0.0
    %905 = vmatprep.subr.mxu0 0.0
    %906 = vmatpush2.msra.mxu0 0.0
    %907 = vmatprep.subr.mxu0 0.0
    %908 = vmatpush2.msra.mxu0 0.0
    %909 = vmatprep.subr.mxu0 0.0
    %910 = vmatpush2.msra.mxu0 0.0
    %911 = vmatprep.subr.mxu0 0.0
    %912 = vmatpush2.msra.mxu0 0.0
    %913 = vmatprep.mubr.f32.mxu0 0.0
    %914 = vmatmul.mubr.f32.gmra.mxu0 %v829
    %v915 = vpop.f32.mrf.mxu0
    %v916 = vadd.f32 0.0, %v915
    %v917 = vpop.f32.mrf.mxu0
    %918 = vdwg.mxu0
    %s919 = scalar_lea.vmem [#allocation8], 48
    %v920 = vld [vmem:[%s919] sm:$0xff]
    %v921 = vmul.f32 %v828, 0.8
    %v922 = vadd.f32 %v921, %v916
    %s923 = scalar_lea.vmem [#allocation2], 48
    %v924 = vld [vmem:[%s923] sm:$0xff]
    %v925 = vadd.f32 %v922, %v924
    %v926 = vmul.f32 %v920, 0.2
    %v927 = vadd.f32 %v925, %v926
    %v928 = vtanh.pop %v927
    %s929 = scalar_lea.vmem [#allocation14], 48
    %930 = vst [vmem:[%s929] sm:$0xff] %v927
    %931 = vst [vmem:[%s923] sm:$0xff] %v928
    %v932 = vld [vmem:[#allocation11] sm:$0xff]
    %v933 = vld [vmem:[#allocation11 + $0x8] sm:$0xff]
    %v934 = vld [vmem:[#allocation11 + $0x10] sm:$0xff]
    %v935 = vld [vmem:[#allocation11 + $0x18] sm:$0xff]
    %v936 = vld [vmem:[#allocation11 + $0x20] sm:$0xff]
    %v937 = vld [vmem:[#allocation11 + $0x28] sm:$0xff]
    %v938 = vld [vmem:[#allocation11 + $0x30] sm:$0xff]
    %v939 = vld [vmem:[#allocation11 + $0x38] sm:$0xff]
    %v940 = vld [vmem:[#allocation11 + $0x40] sm:$0xff]
    %v941 = vld [vmem:[#allocation11 + $0x48] sm:$0xff]
    %v942 = vld [vmem:[#allocation11 + $0x50] sm:$0xff]
    %v943 = vld [vmem:[#allocation11 + $0x58] sm:$0xff]
    %v944 = vld [vmem:[#allocation11 + $0x60] sm:$0xff]
    %v945 = vld [vmem:[#allocation11 + $0x68] sm:$0xff]
    %v946 = vld [vmem:[#allocation11 + $0x70] sm:$0xff]
    %v947 = vld [vmem:[#allocation11 + $0x78] sm:$0xff]
    %948 = vmatprep.subr.mxu0 0.0
    %949 = vmatpush1.msra.mxu0 %v947
    %950 = vmatprep.subr.mxu0 0.0
    %951 = vmatpush1.msra.mxu0 %v946
    %952 = vmatprep.subr.mxu0 0.0
    %953 = vmatpush1.msra.mxu0 %v945
    %954 = vmatprep.subr.mxu0 0.0
    %955 = vmatpush1.msra.mxu0 %v944
    %956 = vmatprep.subr.mxu0 0.0
    %957 = vmatpush1.msra.mxu0 %v943
    %958 = vmatprep.subr.mxu0 0.0
    %959 = vmatpush1.msra.mxu0 %v942
    %960 = vmatprep.subr.mxu0 0.0
    %961 = vmatpush1.msra.mxu0 %v941
    %962 = vmatprep.subr.mxu0 0.0
    %963 = vmatpush1.msra.mxu0 %v940
    %964 = vmatprep.subr.mxu0 0.0
    %965 = vmatpush1.msra.mxu0 %v939
    %966 = vmatprep.subr.mxu0 0.0
    %967 = vmatpush1.msra.mxu0 %v938
    %968 = vmatprep.subr.mxu0 0.0
    %969 = vmatpush1.msra.mxu0 %v937
    %970 = vmatprep.subr.mxu0 0.0
    %971 = vmatpush1.msra.mxu0 %v936
    %972 = vmatprep.subr.mxu0 0.0
    %973 = vmatpush1.msra.mxu0 %v935
    %974 = vmatprep.subr.mxu0 0.0
    %975 = vmatpush1.msra.mxu0 %v934
    %976 = vmatprep.subr.mxu0 0.0
    %977 = vmatpush1.msra.mxu0 %v933
    %978 = vmatprep.subr.mxu0 0.0
    %979 = vmatpush1.msra.mxu0 %v932
    %980 = vmatprep.subr.mxu0 0.0
    %981 = vmatpush2.msra.mxu0 0.0
    %982 = vmatprep.subr.mxu0 0.0
    %983 = vmatpush2.msra.mxu0 0.0
    %984 = vmatprep.subr.mxu0 0.0
    %985 = vmatpush2.msra.mxu0 0.0
    %986 = vmatprep.subr.mxu0 0.0
    %987 = vmatpush2.msra.mxu0 0.0
    %988 = vmatprep.subr.mxu0 0.0
    %989 = vmatpush2.msra.mxu0 0.0
    %990 = vmatprep.subr.mxu0 0.0
    %991 = vmatpush2.msra.mxu0 0.0
    %992 = vmatprep.subr.mxu0 0.0
    %993 = vmatpush2.msra.mxu0 0.0
    %994 = vmatprep.subr.mxu0 0.0
    %995 = vmatpush2.msra.mxu0 0.0
    %996 = vmatprep.subr.mxu0 0.0
    %997 = vmatpush2.msra.mxu0 0.0
    %998 = vmatprep.subr.mxu0 0.0
    %999 = vmatpush2.msra.mxu0 0.0
    %1000 = vmatprep.subr.mxu0 0.0
    %1001 = vmatpush2.msra.mxu0 0.0
    %1002 = vmatprep.subr.mxu0 0.0
    %1003 = vmatpush2.msra.mxu0 0.0
    %1004 = vmatprep.subr.mxu0 0.0
    %1005 = vmatpush2.msra.mxu0 0.0
    %1006 = vmatprep.subr.mxu0 0.0
    %1007 = vmatpush2.msra.mxu0 0.0
    %1008 = vmatprep.subr.mxu0 0.0
    %1009 = vmatpush2.msra.mxu0 0.0
    %1010 = vmatprep.subr.mxu0 0.0
    %1011 = vmatpush2.msra.mxu0 0.0
    %1012 = vmatprep.mubr.f32.mxu0 0.0
    %1013 = vmatmul.mubr.f32.gmra.mxu0 %v928
    %v1014 = vpop.f32.mrf.mxu0
    %v1015 = vadd.f32 0.0, %v1014
    %v1016 = vpop.f32.mrf.mxu0
    %1017 = vdwg.mxu0
    %s1018 = scalar_lea.vmem [#allocation8], 56
    %v1019 = vld [vmem:[%s1018] sm:$0xff]
    %v1020 = vmul.f32 %v927, 0.8
    %v1021 = vadd.f32 %v1020, %v1015
    %s1022 = scalar_lea.vmem [#allocation2], 56
    %v1023 = vld [vmem:[%s1022] sm:$0xff]
    %v1024 = vadd.f32 %v1021, %v1023
    %v1025 = vmul.f32 %v1019, 0.2
    %v1026 = vadd.f32 %v1024, %v1025
    %v1027 = vtanh.pop %v1026
    %s1028 = scalar_lea.vmem [#allocation14], 56
    %1029 = vst [vmem:[%s1028] sm:$0xff] %v1026
    %1030 = vst [vmem:[%s1022] sm:$0xff] %v1027
    %1031 = vst [vmem:[#allocation3] sm:$0xff] %v1026
    %1032 = vst [vmem:[#allocation4] sm:$0xff] %v1027
    %v1033 = vld [vmem:[#allocation2] sm:$0xff]
    %v1034 = vld [vmem:[#allocation2 + $0x8] sm:$0xff]
    %v1035 = vld [vmem:[#allocation2 + $0x10] sm:$0xff]
    %v1036 = vld [vmem:[#allocation2 + $0x18] sm:$0xff]
    %v1037 = vld [vmem:[#allocation2 + $0x20] sm:$0xff]
    %v1038 = vld [vmem:[#allocation2 + $0x28] sm:$0xff]
    %v1039 = vld [vmem:[#allocation2 + $0x30] sm:$0xff]
    %v1040 = vld [vmem:[#allocation2 + $0x38] sm:$0xff]
    %v1041 = vld [vmem:[#allocation13] sm:$0xff]
    %v1042 = vld [vmem:[#allocation13 + $0x8] sm:$0xff]
    %v1043 = vld [vmem:[#allocation13 + $0x10] sm:$0xff]
    %v1044 = vld [vmem:[#allocation13 + $0x18] sm:$0xff]
    %v1045 = vld [vmem:[#allocation13 + $0x20] sm:$0xff]
    %v1046 = vld [vmem:[#allocation13 + $0x28] sm:$0xff]
    %v1047 = vld [vmem:[#allocation13 + $0x30] sm:$0xff]
    %v1048 = vld [vmem:[#allocation13 + $0x38] sm:$0xff]
    %v1049 = vld [vmem:[#allocation13 + $0x40] sm:$0xff]
    %v1050 = vld [vmem:[#allocation13 + $0x48] sm:$0xff]
    %v1051 = vld [vmem:[#allocation13 + $0x50] sm:$0xff]
    %v1052 = vld [vmem:[#allocation13 + $0x58] sm:$0xff]
    %v1053 = vld [vmem:[#allocation13 + $0x60] sm:$0xff]
    %v1054 = vld [vmem:[#allocation13 + $0x68] sm:$0xff]
    %v1055 = vld [vmem:[#allocation13 + $0x70] sm:$0xff]
    %v1056 = vld [vmem:[#allocation13 + $0x78] sm:$0xff]
    %1057 = vmatprep.subr.mxu0 0.0
    %1058 = vmatpush1.msra.mxu0 %v1056
    %1059 = vmatprep.subr.mxu0 0.0
    %1060 = vmatpush1.msra.mxu0 %v1055
    %1061 = vmatprep.subr.mxu0 0.0
    %1062 = vmatpush1.msra.mxu0 %v1054
    %1063 = vmatprep.subr.mxu0 0.0
    %1064 = vmatpush1.msra.mxu0 %v1053
    %1065 = vmatprep.subr.mxu0 0.0
    %1066 = vmatpush1.msra.mxu0 %v1052
    %1067 = vmatprep.subr.mxu0 0.0
    %1068 = vmatpush1.msra.mxu0 %v1051
    %1069 = vmatprep.subr.mxu0 0.0
    %1070 = vmatpush1.msra.mxu0 %v1050
    %1071 = vmatprep.subr.mxu0 0.0
    %1072 = vmatpush1.msra.mxu0 %v1049
    %1073 = vmatprep.subr.mxu0 0.0
    %1074 = vmatpush1.msra.mxu0 %v1048
    %1075 = vmatprep.subr.mxu0 0.0
    %1076 = vmatpush1.msra.mxu0 %v1047
    %1077 = vmatprep.subr.mxu0 0.0
    %1078 = vmatpush1.msra.mxu0 %v1046
    %1079 = vmatprep.subr.mxu0 0.0
    %1080 = vmatpush1.msra.mxu0 %v1045
    %1081 = vmatprep.subr.mxu0 0.0
    %1082 = vmatpush1.msra.mxu0 %v1044
    %1083 = vmatprep.subr.mxu0 0.0
    %1084 = vmatpush1.msra.mxu0 %v1043
    %1085 = vmatprep.subr.mxu0 0.0
    %1086 = vmatpush1.msra.mxu0 %v1042
    %1087 = vmatprep.subr.mxu0 0.0
    %1088 = vmatpush1.msra.mxu0 %v1041
    %1089 = vmatprep.subr.mxu0 0.0
    %1090 = vmatpush2.msra.mxu0 0.0
    %1091 = vmatprep.subr.mxu0 0.0
    %1092 = vmatpush2.msra.mxu0 0.0
    %1093 = vmatprep.subr.mxu0 0.0
    %1094 = vmatpush2.msra.mxu0 0.0
    %1095 = vmatprep.subr.mxu0 0.0
    %1096 = vmatpush2.msra.mxu0 0.0
    %1097 = vmatprep.subr.mxu0 0.0
    %1098 = vmatpush2.msra.mxu0 0.0
    %1099 = vmatprep.subr.mxu0 0.0
    %1100 = vmatpush2.msra.mxu0 0.0
    %1101 = vmatprep.subr.mxu0 0.0
    %1102 = vmatpush2.msra.mxu0 0.0
    %1103 = vmatprep.subr.mxu0 0.0
    %1104 = vmatpush2.msra.mxu0 0.0
    %1105 = vmatprep.subr.mxu0 0.0
    %1106 = vmatpush2.msra.mxu0 0.0
    %1107 = vmatprep.subr.mxu0 0.0
    %1108 = vmatpush2.msra.mxu0 0.0
    %1109 = vmatprep.subr.mxu0 0.0
    %1110 = vmatpush2.msra.mxu0 0.0
    %1111 = vmatprep.subr.mxu0 0.0
    %1112 = vmatpush2.msra.mxu0 0.0
    %1113 = vmatprep.subr.mxu0 0.0
    %1114 = vmatpush2.msra.mxu0 0.0
    %1115 = vmatprep.subr.mxu0 0.0
    %1116 = vmatpush2.msra.mxu0 0.0
    %1117 = vmatprep.subr.mxu0 0.0
    %1118 = vmatpush2.msra.mxu0 0.0
    %1119 = vmatprep.subr.mxu0 0.0
    %1120 = vmatpush2.msra.mxu0 0.0
    %1121 = vmatprep.mubr.f32.mxu0 0.0
    %1122 = vmatmul.mubr.f32.gmra.mxu0 %v1033
    %v1123 = vpop.f32.mrf.mxu0
    %v1124 = vadd.f32 0.0, %v1123
    %v1125 = vpop.f32.mrf.mxu0
    %1126 = vmatprep.mubr.f32.mxu0 0.0
    %1127 = vmatmul.mubr.f32.gmra.mxu0 %v1034
    %v1128 = vpop.f32.mrf.mxu0
    %v1129 = vadd.f32 0.0, %v1128
    %v1130 = vpop.f32.mrf.mxu0
    %1131 = vmatprep.mubr.f32.mxu0 0.0
    %1132 = vmatmul.mubr.f32.gmra.mxu0 %v1035
    %v1133 = vpop.f32.mrf.mxu0
    %v1134 = vadd.f32 0.0, %v1133
    %v1135 = vpop.f32.mrf.mxu0
    %1136 = vmatprep.mubr.f32.mxu0 0.0
    %1137 = vmatmul.mubr.f32.gmra.mxu0 %v1036
    %v1138 = vpop.f32.mrf.mxu0
    %v1139 = vadd.f32 0.0, %v1138
    %v1140 = vpop.f32.mrf.mxu0
    %1141 = vmatprep.mubr.f32.mxu0 0.0
    %1142 = vmatmul.mubr.f32.gmra.mxu0 %v1037
    %v1143 = vpop.f32.mrf.mxu0
    %v1144 = vadd.f32 0.0, %v1143
    %v1145 = vpop.f32.mrf.mxu0
    %1146 = vmatprep.mubr.f32.mxu0 0.0
    %1147 = vmatmul.mubr.f32.gmra.mxu0 %v1038
    %v1148 = vpop.f32.mrf.mxu0
    %v1149 = vadd.f32 0.0, %v1148
    %v1150 = vpop.f32.mrf.mxu0
    %1151 = vmatprep.mubr.f32.mxu0 0.0
    %1152 = vmatmul.mubr.f32.gmra.mxu0 %v1039
    %v1153 = vpop.f32.mrf.mxu0
    %v1154 = vadd.f32 0.0, %v1153
    %v1155 = vpop.f32.mrf.mxu0
    %1156 = vmatprep.mubr.f32.mxu0 0.0
    %1157 = vmatmul.mubr.f32.gmra.mxu0 %v1040
    %v1158 = vpop.f32.mrf.mxu0
    %v1159 = vadd.f32 0.0, %v1158
    %v1160 = vpop.f32.mrf.mxu0
    %1161 = vdwg.mxu0
    %1162 = vst [vmem:[#allocation15] sm:$0xff] %v1124
    %1163 = vst [vmem:[#allocation15 + $0x8] sm:$0xff] %v1129
    %1164 = vst [vmem:[#allocation15 + $0x10] sm:$0xff] %v1134
    %1165 = vst [vmem:[#allocation15 + $0x18] sm:$0xff] %v1139
    %1166 = vst [vmem:[#allocation15 + $0x20] sm:$0xff] %v1144
    %1167 = vst [vmem:[#allocation15 + $0x28] sm:$0xff] %v1149
    %1168 = vst [vmem:[#allocation15 + $0x30] sm:$0xff] %v1154
    %1169 = vst [vmem:[#allocation15 + $0x38] sm:$0xff] %v1159
    // Predicated region
    $region50: #{tpu_custom_call.1} parent=1 // pred_check
      _
    $region51: #{tpu_custom_call.1} parent=1 // pred_check_branch
      %1171 = sbr.rel (0) target = $region53
    $region52: #{tpu_custom_call.1} parent=1 // pred_region
      %s1173 = ssub.s32 1024, 1024
      %1174 = vsyncadd [#allocation7], %s1173
      %s1175 = sshll.u32 [#allocation14], 4
      %s1176 = int_to_ptr.vmem [resolvable:$true] %s1175
      %1181 = dma.vmem_to_hbm [thread:$0]  %s1176, 1024, %s6, [#allocation7], 128, 128, 8
    $region53: #{tpu_custom_call.1} parent=1 // pred_fallthru
      _
    // Predicated region
    $region54: #{tpu_custom_call.1} parent=1 // pred_check
      _
    $region55: #{tpu_custom_call.1} parent=1 // pred_check_branch
      %1183 = sbr.rel (0) target = $region57
    $region56: #{tpu_custom_call.1} parent=1 // pred_region
      %s1185 = ssub.s32 1024, 1024
      %1186 = vsyncadd [#allocation16], %s1185
      %s1187 = sshll.u32 [#allocation15], 4
      %s1188 = int_to_ptr.vmem [resolvable:$true] %s1187
      %1193 = dma.vmem_to_hbm [thread:$0]  %s1188, 1024, %s7, [#allocation16], 128, 128, 8
    $region57: #{tpu_custom_call.1} parent=1 // pred_fallthru
      _
    // Predicated region
    $region58: #{tpu_custom_call.1} parent=1 // pred_check
      _
    $region59: #{tpu_custom_call.1} parent=1 // pred_check_branch
      %1195 = sbr.rel (0) target = $region61
    $region60: #{tpu_custom_call.1} parent=1 // pred_region
      %1196 = dma.done [#allocation7], 1024
    $region61: #{tpu_custom_call.1} parent=1 // pred_fallthru
      _
    // Predicated region
    $region62: #{tpu_custom_call.1} parent=1 // pred_check
      _
    $region63: #{tpu_custom_call.1} parent=1 // pred_check_branch
      %1198 = sbr.rel (0) target = $region65
    $region64: #{tpu_custom_call.1} parent=1 // pred_region
      %1199 = dma.done [#allocation16], 1024
    $region65: #{tpu_custom_call.1} parent=1 // pred_fallthru
      _
    %1200 = vsyncpa [#allocation6], 1
    %1201 = vsyncpa [#allocation9], 1
    %1202 = vsyncpa [#allocation12], 1
    %1203 = vsyncpa [#allocation7], 1
    %1204 = vsyncpa [#allocation16], 1

</llo_original>
